<compile_context>
chip_gen: v7x
topology: tpu7x:2x2x1
jax: 0.10.0
libtpu: 0.0.40
codegen_flags: <defaults>
</compile_context>

<pallas_src>
import functools

import jax
import jax.numpy as jnp
from jax.experimental import pallas as pl
from jax.experimental.pallas import tpu as pltpu

BN_EPS = 1e-5


def layer_gin_kernel(a_ref, v_ref,
                     w1_ref, b1_ref, g1_ref, be1_ref,
                     w2_ref, b2_ref, g2_ref, be2_ref,
                     o_ref,
                     h1_ref, h2_ref, sum1, sq1, sum2, sq2,
                     *, n_valid, tm):
    phase = pl.program_id(0)   # 0: agg+lin1, 1: bn1+lin2, 2: bn2+out
    tile = pl.program_id(1)    # node-row tile index

    row_start = tile * tm
    rows = pl.ds(pl.multiple_of(row_start, tm), tm)

    # Mask of real (non-padded) node rows inside this tile; padded rows carry
    # h == bias after the matmul and must not pollute the batch statistics.
    row_ids = row_start + jax.lax.broadcasted_iota(jnp.int32, (tm, 1), 0)
    valid = row_ids < n_valid
    inv_n = 1.0 / float(n_valid)

    # ---- phase 0: aggregation + Linear1, accumulate BN1 sum / sumsq --------
    @pl.when(phase == 0)
    def _phase0():
        @pl.when(tile == 0)
        def _init_stats():
            sum1[...] = jnp.zeros_like(sum1)
            sq1[...] = jnp.zeros_like(sq1)
            sum2[...] = jnp.zeros_like(sum2)
            sq2[...] = jnp.zeros_like(sq2)

        # epsilon is folded into a (a_eps = a + eps*I): one bf16 MXU matmul.
        agg = jnp.dot(a_ref[...], v_ref[...],
                      preferred_element_type=jnp.float32)
        h1 = jnp.dot(agg.astype(jnp.bfloat16), w1_ref[...],
                     preferred_element_type=jnp.float32) + b1_ref[...]
        h1_ref[rows, :] = h1

        hm = jnp.where(valid, h1, 0.0)
        sum1[...] += jnp.sum(hm, axis=0, keepdims=True)
        sq1[...] += jnp.sum(hm * hm, axis=0, keepdims=True)

    # ---- phase 1: BN1 + ReLU + Linear2, accumulate BN2 sum / sumsq ---------
    @pl.when(phase == 1)
    def _phase1():
        @pl.when(tile == 0)
        def _finalize_bn1():
            mean = sum1[...] * inv_n
            var = jnp.maximum(sq1[...] * inv_n - mean * mean, 0.0)
            scale = g1_ref[...] * jax.lax.rsqrt(var + BN_EPS)
            sum1[...] = scale                        # repurposed: BN1 scale
            sq1[...] = be1_ref[...] - mean * scale   # repurposed: BN1 shift

        h1 = h1_ref[rows, :]
        h1n = jnp.maximum(h1 * sum1[...] + sq1[...], 0.0)
        h2 = jnp.dot(h1n.astype(jnp.bfloat16), w2_ref[...],
                     preferred_element_type=jnp.float32) + b2_ref[...]
        h2_ref[rows, :] = h2

        hm = jnp.where(valid, h2, 0.0)
        sum2[...] += jnp.sum(hm, axis=0, keepdims=True)
        sq2[...] += jnp.sum(hm * hm, axis=0, keepdims=True)

    # ---- phase 2: BN2 + ReLU -> output --------------------------------------
    @pl.when(phase == 2)
    def _phase2():
        @pl.when(tile == 0)
        def _finalize_bn2():
            mean = sum2[...] * inv_n
            var = jnp.maximum(sq2[...] * inv_n - mean * mean, 0.0)
            scale = g2_ref[...] * jax.lax.rsqrt(var + BN_EPS)
            sum2[...] = scale                        # repurposed: BN2 scale
            sq2[...] = be2_ref[...] - mean * scale   # repurposed: BN2 shift

        h2 = h2_ref[rows, :]
        o_ref[...] = jnp.maximum(h2 * sum2[...] + sq2[...], 0.0)


def _round_up(x, m):
    return ((x + m - 1) // m) * m


def _vmem_limit_bytes(tm, np_, din_p, h_p, dout_p):
    need = (
        2 * tm * np_ * 2                        # double-buffered bf16 a tile
        + 2 * np_ * din_p * 2                   # resident bf16 v
        + 2 * (din_p * h_p + h_p * dout_p) * 2  # resident bf16 weights
        + 2 * tm * dout_p * 4                   # double-buffered f32 out tile
        + np_ * (h_p + dout_p) * 4              # h1/h2 f32 scratch
        + 4 * (h_p + dout_p) * 4                # BN stat scratch
        + (1 << 20)                             # small operands + slack
    )
    # Never below the default scoped limit; cap below physical VMEM.
    return int(min(max(need * 5 // 4, 32 << 20), 96 << 20))


def layer_gin_forward(v, a, params, *, tm=256):
    """v: [N, Din] f32 node features, a: [N, N] f32 dense adjacency."""
    N, Din = v.shape
    H = params["w1"].shape[1]
    Dout = params["w2"].shape[1]

    tm = int(tm)
    assert tm % 16 == 0, "row tile must be a multiple of 16 (bf16 sublane pack)"
    Np = _round_up(N, tm)
    Din_p = _round_up(Din, 128)
    H_p = _round_up(H, 128)
    Dout_p = _round_up(Dout, 128)
    T = Np // tm

    eps = jnp.asarray(params["epsilon"], jnp.float32).reshape(-1)[0]

    # Fold the GIN epsilon into the adjacency: a_eps = a + eps*I.  (0/1 entries
    # are exact in bf16; a non-zero learned epsilon is rounded to bf16 here.)
    a_eps = a.astype(jnp.float32) + eps * jnp.eye(N, dtype=jnp.float32)

    a_p = jnp.pad(a_eps, ((0, Np - N), (0, Np - N))).astype(jnp.bfloat16)
    v_p = jnp.pad(v.astype(jnp.float32),
                  ((0, Np - N), (0, Din_p - Din))).astype(jnp.bfloat16)
    w1_p = jnp.pad(params["w1"], ((0, Din_p - Din), (0, H_p - H))).astype(jnp.bfloat16)
    w2_p = jnp.pad(params["w2"], ((0, H_p - H), (0, Dout_p - Dout))).astype(jnp.bfloat16)
    b1_p = jnp.pad(params["b1"], ((0, 0), (0, H_p - H))).astype(jnp.float32)
    g1_p = jnp.pad(params["gamma1"], ((0, 0), (0, H_p - H))).astype(jnp.float32)
    be1_p = jnp.pad(params["beta1"], ((0, 0), (0, H_p - H))).astype(jnp.float32)
    b2_p = jnp.pad(params["b2"], ((0, 0), (0, Dout_p - Dout))).astype(jnp.float32)
    g2_p = jnp.pad(params["gamma2"], ((0, 0), (0, Dout_p - Dout))).astype(jnp.float32)
    be2_p = jnp.pad(params["beta2"], ((0, 0), (0, Dout_p - Dout))).astype(jnp.float32)

    const = lambda p, i: (0, 0)

    def a_index(p, i):
        # a is consumed only in phase 0; keep the last-fetched tile resident
        # during phases 1-2 so no redundant adjacency DMA is issued.
        return (jnp.where(p == 0, i, T - 1), 0)

    def out_index(p, i):
        # only phase 2 writes the output; park the block at 0 until then so no
        # uninitialized tile is ever written back.
        return (jnp.where(p == 2, i, 0), 0)

    out_p = pl.pallas_call(
        functools.partial(layer_gin_kernel, n_valid=N, tm=tm),
        out_shape=jax.ShapeDtypeStruct((Np, Dout_p), jnp.float32),
        grid=(3, T),
        in_specs=[
            pl.BlockSpec((tm, Np), a_index),      # a_eps (bf16, row tiles)
            pl.BlockSpec((Np, Din_p), const),     # v     (bf16, resident)
            pl.BlockSpec((Din_p, H_p), const),    # W1    (bf16, resident)
            pl.BlockSpec((1, H_p), const),        # b1
            pl.BlockSpec((1, H_p), const),        # gamma1
            pl.BlockSpec((1, H_p), const),        # beta1
            pl.BlockSpec((H_p, Dout_p), const),   # W2    (bf16, resident)
            pl.BlockSpec((1, Dout_p), const),     # b2
            pl.BlockSpec((1, Dout_p), const),     # gamma2
            pl.BlockSpec((1, Dout_p), const),     # beta2
        ],
        out_specs=pl.BlockSpec((tm, Dout_p), out_index),
        scratch_shapes=[
            pltpu.VMEM((Np, H_p), jnp.float32),     # h1 (pre-BN1), all rows
            pltpu.VMEM((Np, Dout_p), jnp.float32),  # h2 (pre-BN2), all rows
            pltpu.VMEM((1, H_p), jnp.float32),      # BN1 sum   -> scale
            pltpu.VMEM((1, H_p), jnp.float32),      # BN1 sumsq -> shift
            pltpu.VMEM((1, Dout_p), jnp.float32),   # BN2 sum   -> scale
            pltpu.VMEM((1, Dout_p), jnp.float32),   # BN2 sumsq -> shift
        ],
        compiler_params=pltpu.CompilerParams(
            # Row-tile axis carries the BN reduction through shared scratch,
            # so both axes stay "arbitrary" (sequential).
            dimension_semantics=("arbitrary", "arbitrary"),
            vmem_limit_bytes=_vmem_limit_bytes(tm, Np, Din_p, H_p, Dout_p),
        ),
    )(a_p, v_p, w1_p, b1_p, g1_p, be1_p, w2_p, b2_p, g2_p, be2_p)

    return out_p[:N, :Dout]


def init_params(key, input_dim, hidden_dim, output_dim):
    """Deterministic parameter init mimicking PyTorch defaults (shapes only matter)."""
    k1, k2, k3, k4 = jax.random.split(key, 4)

    def linear_init(kw, kb, fan_in, fan_out):
        bound = 1.0 / jnp.sqrt(jnp.float32(fan_in))
        # PyTorch Linear stores weight as [out, in]; we pass it transposed [in, out].
        w = jax.random.uniform(kw, (fan_in, fan_out), jnp.float32, -bound, bound)
        b = jax.random.uniform(kb, (1, fan_out), jnp.float32, -bound, bound)
        return w, b

    w1, b1 = linear_init(k1, k2, input_dim, hidden_dim)
    w2, b2 = linear_init(k3, k4, hidden_dim, output_dim)

    return {
        "epsilon": jnp.zeros((1, 1), jnp.float32),          # nn.Parameter([[0.0]])
        "w1": w1, "b1": b1,
        "gamma1": jnp.ones((1, hidden_dim), jnp.float32),
        "beta1": jnp.zeros((1, hidden_dim), jnp.float32),
        "w2": w2, "b2": b2,
        "gamma2": jnp.ones((1, output_dim), jnp.float32),
        "beta2": jnp.zeros((1, output_dim), jnp.float32),
    }


def layer_gin_reference(v, a, p, *, bf16_matmuls):
    """Pure-JAX reference; bf16_matmuls=True matches the kernel's MXU precision."""
    eps = jnp.asarray(p["epsilon"], jnp.float32).reshape(-1)[0]

    def mm(x, w):
        if bf16_matmuls:
            return jnp.dot(x.astype(jnp.bfloat16), w.astype(jnp.bfloat16),
                           preferred_element_type=jnp.float32)
        return jnp.dot(x, w, preferred_element_type=jnp.float32)

    def bn_relu(h, gamma, beta):
        m = jnp.mean(h, axis=0, keepdims=True)
        var = jnp.maximum(jnp.mean(h * h, axis=0, keepdims=True) - m * m, 0.0)
        scale = gamma * jax.lax.rsqrt(var + BN_EPS)
        return jnp.maximum(h * scale + (beta - m * scale), 0.0)

    a_eps = a + eps * jnp.eye(a.shape[0], dtype=a.dtype)
    agg = mm(a_eps, v)
    h1 = mm(agg, p["w1"]) + p["b1"]
    h1n = bn_relu(h1, p["gamma1"], p["beta1"])
    h2 = mm(h1n, p["w2"]) + p["b2"]
    return bn_relu(h2, p["gamma2"], p["beta2"])


if __name__ == "__main__":
    # n=116 matches the default node count in the PyTorch forward signature.
    N, INPUT_DIM, HIDDEN_DIM, OUTPUT_DIM = 116, 8, 32, 32

    key = jax.random.PRNGKey(0)
    kv, ka, kp = jax.random.split(key, 3)

    v = jax.random.normal(kv, (N, INPUT_DIM), jnp.float32)
    # Dense stand-in for the sparse adjacency (sparse.mm == dense matmul here).
    a = (jax.random.uniform(ka, (N, N), jnp.float32) < 0.3).astype(jnp.float32)

    params = init_params(kp, INPUT_DIM, HIDDEN_DIM, OUTPUT_DIM)

    # tm=32 -> 4 row tiles: exercises the cross-tile BatchNorm reduction and
    # padded-row masking (N=116 pads to 128).  Production would use tm>=256.
    out = layer_gin_forward(v, a, params, tm=32)
    out = jax.block_until_ready(out)
    assert out.shape == (N, OUTPUT_DIM)

    # Tight check vs. a pure-JAX reference using the same bf16 MXU inputs.
    ref_bf16 = layer_gin_reference(v, a, params, bf16_matmuls=True)
    assert jnp.allclose(out, ref_bf16, atol=5e-3, rtol=5e-3), \
        float(jnp.max(jnp.abs(out - ref_bf16)))

    # Loose sanity check vs. the full-f32 reference (difference = bf16 rounding).
    ref_f32 = layer_gin_reference(v, a, params, bf16_matmuls=False)
    assert jnp.allclose(out, ref_f32, atol=1e-1, rtol=1e-1), \
        float(jnp.max(jnp.abs(out - ref_f32)))

    print("KERNEL_OK")
</pallas_src>

<mosaic_0001>
module attributes {stable_mosaic.version = 11 : i64} {
  func.func @layer_gin_kernel(%arg0: i32, %arg1: i32, %arg2: memref<32x128xbf16, #tpu.memory_space<vmem>>, %arg3: memref<128x128xbf16, #tpu.memory_space<vmem>>, %arg4: memref<128x128xbf16, #tpu.memory_space<vmem>>, %arg5: memref<1x128xf32, #tpu.memory_space<vmem>>, %arg6: memref<1x128xf32, #tpu.memory_space<vmem>>, %arg7: memref<1x128xf32, #tpu.memory_space<vmem>>, %arg8: memref<128x128xbf16, #tpu.memory_space<vmem>>, %arg9: memref<1x128xf32, #tpu.memory_space<vmem>>, %arg10: memref<1x128xf32, #tpu.memory_space<vmem>>, %arg11: memref<1x128xf32, #tpu.memory_space<vmem>>, %arg12: memref<32x128xf32, #tpu.memory_space<vmem>>, %arg13: memref<128x128xf32, #tpu.memory_space<vmem>>, %arg14: memref<128x128xf32, #tpu.memory_space<vmem>>, %arg15: memref<1x128xf32, #tpu.memory_space<vmem>>, %arg16: memref<1x128xf32, #tpu.memory_space<vmem>>, %arg17: memref<1x128xf32, #tpu.memory_space<vmem>>, %arg18: memref<1x128xf32, #tpu.memory_space<vmem>>) attributes {dimension_semantics = [#tpu.dimension_semantics<arbitrary>, #tpu.dimension_semantics<arbitrary>], iteration_bounds = array<i64: 3, 4>, scalar_prefetch = 0 : i64, scratch_operands = 6 : i64, tpu.core_type = #tpu.core_type<tc>, window_params = [{transform_indices = @transform_0, window_bounds = array<i64: 32, 128>}, {pipeline_mode = #tpu.pipeline_mode<synchronous>, transform_indices = @transform_1, window_bounds = array<i64: 128, 128>}, {pipeline_mode = #tpu.pipeline_mode<synchronous>, transform_indices = @transform_2, window_bounds = array<i64: 128, 128>}, {pipeline_mode = #tpu.pipeline_mode<synchronous>, transform_indices = @transform_3, window_bounds = array<i64: 1, 128>}, {pipeline_mode = #tpu.pipeline_mode<synchronous>, transform_indices = @transform_4, window_bounds = array<i64: 1, 128>}, {pipeline_mode = #tpu.pipeline_mode<synchronous>, transform_indices = @transform_5, window_bounds = array<i64: 1, 128>}, {pipeline_mode = #tpu.pipeline_mode<synchronous>, transform_indices = @transform_6, window_bounds = array<i64: 128, 128>}, {pipeline_mode = #tpu.pipeline_mode<synchronous>, transform_indices = @transform_7, window_bounds = array<i64: 1, 128>}, {pipeline_mode = #tpu.pipeline_mode<synchronous>, transform_indices = @transform_8, window_bounds = array<i64: 1, 128>}, {pipeline_mode = #tpu.pipeline_mode<synchronous>, transform_indices = @transform_9, window_bounds = array<i64: 1, 128>}, {transform_indices = @transform_10, window_bounds = array<i64: 32, 128>}]} {
    %c32_i32 = arith.constant 32 : i32
    %0 = arith.muli %arg1, %c32_i32 : i32
    %1 = tpu.assume_multiple %0, 32 : i32
    %2 = tpu.iota {dimensions = array<i32: 0>} : vector<32x1xi32>
    %3 = vector.broadcast %0 : i32 to vector<32x1xi32>
    %4 = arith.addi %3, %2 : vector<32x1xi32>
    %c116_i32 = arith.constant 116 : i32
    %5 = vector.broadcast %c116_i32 : i32 to vector<32x1xi32>
    %6 = arith.cmpi slt, %4, %5 : vector<32x1xi32>
    %c0_i32 = arith.constant 0 : i32
    %7 = arith.cmpi eq, %arg0, %c0_i32 : i32
    %8 = arith.extui %7 : i1 to i32
    %c0_i32_0 = arith.constant 0 : i32
    %9 = arith.cmpi ne, %8, %c0_i32_0 : i32
    scf.if %9 {
      %c0_i32_3 = arith.constant 0 : i32
      %16 = arith.cmpi eq, %arg1, %c0_i32_3 : i32
      %17 = arith.extui %16 : i1 to i32
      %c0_i32_4 = arith.constant 0 : i32
      %18 = arith.cmpi ne, %17, %c0_i32_4 : i32
      scf.if %18 {
        %cst_25 = arith.constant 0.000000e+00 : f32
        %45 = vector.broadcast %cst_25 : f32 to vector<1x128xf32>
        %c0_26 = arith.constant 0 : index
        %c0_27 = arith.constant 0 : index
        %46 = vector.load %arg15[%c0_26, %c0_27] : memref<1x128xf32, #tpu.memory_space<vmem>>, vector<1x128xf32>
        tpu.vector_store %arg15[%c0_26, %c0_27], %45 {strides = array<i32>} : memref<1x128xf32, #tpu.memory_space<vmem>>, vector<1x128xf32>,
        %cst_28 = arith.constant 0.000000e+00 : f32
        %47 = vector.broadcast %cst_28 : f32 to vector<1x128xf32>
        %c0_29 = arith.constant 0 : index
        %c0_30 = arith.constant 0 : index
        %48 = vector.load %arg16[%c0_29, %c0_30] : memref<1x128xf32, #tpu.memory_space<vmem>>, vector<1x128xf32>
        tpu.vector_store %arg16[%c0_29, %c0_30], %47 {strides = array<i32>} : memref<1x128xf32, #tpu.memory_space<vmem>>, vector<1x128xf32>,
        %cst_31 = arith.constant 0.000000e+00 : f32
        %49 = vector.broadcast %cst_31 : f32 to vector<1x128xf32>
        %c0_32 = arith.constant 0 : index
        %c0_33 = arith.constant 0 : index
        %50 = vector.load %arg17[%c0_32, %c0_33] : memref<1x128xf32, #tpu.memory_space<vmem>>, vector<1x128xf32>
        tpu.vector_store %arg17[%c0_32, %c0_33], %49 {strides = array<i32>} : memref<1x128xf32, #tpu.memory_space<vmem>>, vector<1x128xf32>,
        %cst_34 = arith.constant 0.000000e+00 : f32
        %51 = vector.broadcast %cst_34 : f32 to vector<1x128xf32>
        %c0_35 = arith.constant 0 : index
        %c0_36 = arith.constant 0 : index
        %52 = vector.load %arg18[%c0_35, %c0_36] : memref<1x128xf32, #tpu.memory_space<vmem>>, vector<1x128xf32>
        tpu.vector_store %arg18[%c0_35, %c0_36], %51 {strides = array<i32>} : memref<1x128xf32, #tpu.memory_space<vmem>>, vector<1x128xf32>,
      } else {
      }
      %c0 = arith.constant 0 : index
      %c0_5 = arith.constant 0 : index
      %19 = vector.load %arg2[%c0, %c0_5] : memref<32x128xbf16, #tpu.memory_space<vmem>>, vector<32x128xbf16>
      %c0_6 = arith.constant 0 : index
      %c0_7 = arith.constant 0 : index
      %20 = vector.load %arg3[%c0_6, %c0_7] : memref<128x128xbf16, #tpu.memory_space<vmem>>, vector<128x128xbf16>
      %cst = arith.constant dense<0.000000e+00> : vector<32x128xf32>
      %21 = tpu.matmul %19, %20, %cst {dimension_numbers = #tpu.dot_dimension_numbers<[1], [0], [0], [1], [0, 0, 1, 1], [], []>} : vector<32x128xbf16>, vector<128x128xbf16>, vector<32x128xf32> -> vector<32x128xf32>
      %22 = arith.truncf %21 : vector<32x128xf32> to vector<32x128xbf16>
      %c0_8 = arith.constant 0 : index
      %c0_9 = arith.constant 0 : index
      %23 = vector.load %arg4[%c0_8, %c0_9] : memref<128x128xbf16, #tpu.memory_space<vmem>>, vector<128x128xbf16>
      %cst_10 = arith.constant dense<0.000000e+00> : vector<32x128xf32>
      %24 = tpu.matmul %22, %23, %cst_10 {dimension_numbers = #tpu.dot_dimension_numbers<[1], [0], [0], [1], [0, 0, 1, 1], [], []>} : vector<32x128xbf16>, vector<128x128xbf16>, vector<32x128xf32> -> vector<32x128xf32>
      %c0_11 = arith.constant 0 : index
      %c0_12 = arith.constant 0 : index
      %25 = vector.load %arg5[%c0_11, %c0_12] : memref<1x128xf32, #tpu.memory_space<vmem>>, vector<1x128xf32>
      %26 = vector.broadcast %25 : vector<1x128xf32> to vector<32x128xf32>
      %27 = arith.addf %24, %26 : vector<32x128xf32>
      %28 = arith.index_cast %1 : i32 to index
      %c0_13 = arith.constant 0 : index
      %29 = vector.load %arg13[%28, %c0_13] : memref<128x128xf32, #tpu.memory_space<vmem>>, vector<32x128xf32>
      tpu.vector_store %arg13[%28, %c0_13], %27 {strides = array<i32>} : memref<128x128xf32, #tpu.memory_space<vmem>>, vector<32x128xf32>,
      %cst_14 = arith.constant 0.000000e+00 : f32
      %30 = vector.shape_cast %6 : vector<32x1xi1> to vector<32x1xi1>
      %31 = vector.broadcast %30 : vector<32x1xi1> to vector<32x128xi1>
      %32 = vector.broadcast %cst_14 : f32 to vector<32x128xf32>
      %33 = arith.select %31, %27, %32 : vector<32x128xi1>, vector<32x128xf32>
      %c0_15 = arith.constant 0 : index
      %c0_16 = arith.constant 0 : index
      %34 = vector.load %arg15[%c0_15, %c0_16] : memref<1x128xf32, #tpu.memory_space<vmem>>, vector<1x128xf32>
      %cst_17 = arith.constant dense<0.000000e+00> : vector<128xf32>
      %35 = vector.multi_reduction <add>, %33, %cst_17 [0] : vector<32x128xf32> to vector<128xf32>
      %36 = vector.shape_cast %35 : vector<128xf32> to vector<1x128xf32>
      %37 = arith.addf %34, %36 : vector<1x128xf32>
      %c0_18 = arith.constant 0 : index
      %c0_19 = arith.constant 0 : index
      %38 = vector.load %arg15[%c0_18, %c0_19] : memref<1x128xf32, #tpu.memory_space<vmem>>, vector<1x128xf32>
      tpu.vector_store %arg15[%c0_18, %c0_19], %37 {strides = array<i32>} : memref<1x128xf32, #tpu.memory_space<vmem>>, vector<1x128xf32>,
      %c0_20 = arith.constant 0 : index
      %c0_21 = arith.constant 0 : index
      %39 = vector.load %arg16[%c0_20, %c0_21] : memref<1x128xf32, #tpu.memory_space<vmem>>, vector<1x128xf32>
      %40 = arith.mulf %33, %33 : vector<32x128xf32>
      %cst_22 = arith.constant dense<0.000000e+00> : vector<128xf32>
      %41 = vector.multi_reduction <add>, %40, %cst_22 [0] : vector<32x128xf32> to vector<128xf32>
      %42 = vector.shape_cast %41 : vector<128xf32> to vector<1x128xf32>
      %43 = arith.addf %39, %42 : vector<1x128xf32>
      %c0_23 = arith.constant 0 : index
      %c0_24 = arith.constant 0 : index
      %44 = vector.load %arg16[%c0_23, %c0_24] : memref<1x128xf32, #tpu.memory_space<vmem>>, vector<1x128xf32>
      tpu.vector_store %arg16[%c0_23, %c0_24], %43 {strides = array<i32>} : memref<1x128xf32, #tpu.memory_space<vmem>>, vector<1x128xf32>,
    } else {
    }
    %c1_i32 = arith.constant 1 : i32
    %10 = arith.cmpi eq, %arg0, %c1_i32 : i32
    %11 = arith.extui %10 : i1 to i32
    %c0_i32_1 = arith.constant 0 : i32
    %12 = arith.cmpi ne, %11, %c0_i32_1 : i32
    scf.if %12 {
      %c0_i32_3 = arith.constant 0 : i32
      %16 = arith.cmpi eq, %arg1, %c0_i32_3 : i32
      %17 = arith.extui %16 : i1 to i32
      %c0_i32_4 = arith.constant 0 : i32
      %18 = arith.cmpi ne, %17, %c0_i32_4 : i32
      scf.if %18 {
        %c0_26 = arith.constant 0 : index
        %c0_27 = arith.constant 0 : index
        %52 = vector.load %arg15[%c0_26, %c0_27] : memref<1x128xf32, #tpu.memory_space<vmem>>, vector<1x128xf32>
        %cst_28 = arith.constant 8.620690e-03 : f32
        %53 = vector.broadcast %cst_28 : f32 to vector<1x128xf32>
        %54 = arith.mulf %52, %53 : vector<1x128xf32>
        %c0_29 = arith.constant 0 : index
        %c0_30 = arith.constant 0 : index
        %55 = vector.load %arg16[%c0_29, %c0_30] : memref<1x128xf32, #tpu.memory_space<vmem>>, vector<1x128xf32>
        %cst_31 = arith.constant 8.620690e-03 : f32
        %56 = vector.broadcast %cst_31 : f32 to vector<1x128xf32>
        %57 = arith.mulf %55, %56 : vector<1x128xf32>
        %58 = arith.mulf %54, %54 : vector<1x128xf32>
        %59 = arith.subf %57, %58 : vector<1x128xf32>
        %cst_32 = arith.constant 0.000000e+00 : f32
        %60 = vector.broadcast %cst_32 : f32 to vector<1x128xf32>
        %61 = arith.maximumf %59, %60 : vector<1x128xf32>
        %c0_33 = arith.constant 0 : index
        %c0_34 = arith.constant 0 : index
        %62 = vector.load %arg6[%c0_33, %c0_34] : memref<1x128xf32, #tpu.memory_space<vmem>>, vector<1x128xf32>
        %cst_35 = arith.constant 9.99999974E-6 : f32
        %63 = vector.broadcast %cst_35 : f32 to vector<1x128xf32>
        %64 = arith.addf %61, %63 : vector<1x128xf32>
        %65 = math.rsqrt %64 : vector<1x128xf32>
        %66 = arith.mulf %62, %65 : vector<1x128xf32>
        %c0_36 = arith.constant 0 : index
        %c0_37 = arith.constant 0 : index
        %67 = vector.load %arg15[%c0_36, %c0_37] : memref<1x128xf32, #tpu.memory_space<vmem>>, vector<1x128xf32>
        tpu.vector_store %arg15[%c0_36, %c0_37], %66 {strides = array<i32>} : memref<1x128xf32, #tpu.memory_space<vmem>>, vector<1x128xf32>,
        %c0_38 = arith.constant 0 : index
        %c0_39 = arith.constant 0 : index
        %68 = vector.load %arg7[%c0_38, %c0_39] : memref<1x128xf32, #tpu.memory_space<vmem>>, vector<1x128xf32>
        %69 = arith.mulf %54, %66 : vector<1x128xf32>
        %70 = arith.subf %68, %69 : vector<1x128xf32>
        %c0_40 = arith.constant 0 : index
        %c0_41 = arith.constant 0 : index
        %71 = vector.load %arg16[%c0_40, %c0_41] : memref<1x128xf32, #tpu.memory_space<vmem>>, vector<1x128xf32>
        tpu.vector_store %arg16[%c0_40, %c0_41], %70 {strides = array<i32>} : memref<1x128xf32, #tpu.memory_space<vmem>>, vector<1x128xf32>,
      } else {
      }
      %19 = arith.index_cast %1 : i32 to index
      %c0 = arith.constant 0 : index
      %20 = vector.load %arg13[%19, %c0] : memref<128x128xf32, #tpu.memory_space<vmem>>, vector<32x128xf32>
      %c0_5 = arith.constant 0 : index
      %c0_6 = arith.constant 0 : index
      %21 = vector.load %arg15[%c0_5, %c0_6] : memref<1x128xf32, #tpu.memory_space<vmem>>, vector<1x128xf32>
      %22 = vector.broadcast %21 : vector<1x128xf32> to vector<32x128xf32>
      %23 = arith.mulf %20, %22 : vector<32x128xf32>
      %c0_7 = arith.constant 0 : index
      %c0_8 = arith.constant 0 : index
      %24 = vector.load %arg16[%c0_7, %c0_8] : memref<1x128xf32, #tpu.memory_space<vmem>>, vector<1x128xf32>
      %25 = vector.broadcast %24 : vector<1x128xf32> to vector<32x128xf32>
      %26 = arith.addf %23, %25 : vector<32x128xf32>
      %cst = arith.constant 0.000000e+00 : f32
      %27 = vector.broadcast %cst : f32 to vector<32x128xf32>
      %28 = arith.maximumf %26, %27 : vector<32x128xf32>
      %29 = arith.truncf %28 : vector<32x128xf32> to vector<32x128xbf16>
      %c0_9 = arith.constant 0 : index
      %c0_10 = arith.constant 0 : index
      %30 = vector.load %arg8[%c0_9, %c0_10] : memref<128x128xbf16, #tpu.memory_space<vmem>>, vector<128x128xbf16>
      %cst_11 = arith.constant dense<0.000000e+00> : vector<32x128xf32>
      %31 = tpu.matmul %29, %30, %cst_11 {dimension_numbers = #tpu.dot_dimension_numbers<[1], [0], [0], [1], [0, 0, 1, 1], [], []>} : vector<32x128xbf16>, vector<128x128xbf16>, vector<32x128xf32> -> vector<32x128xf32>
      %c0_12 = arith.constant 0 : index
      %c0_13 = arith.constant 0 : index
      %32 = vector.load %arg9[%c0_12, %c0_13] : memref<1x128xf32, #tpu.memory_space<vmem>>, vector<1x128xf32>
      %33 = vector.broadcast %32 : vector<1x128xf32> to vector<32x128xf32>
      %34 = arith.addf %31, %33 : vector<32x128xf32>
      %35 = arith.index_cast %1 : i32 to index
      %c0_14 = arith.constant 0 : index
      %36 = vector.load %arg14[%35, %c0_14] : memref<128x128xf32, #tpu.memory_space<vmem>>, vector<32x128xf32>
      tpu.vector_store %arg14[%35, %c0_14], %34 {strides = array<i32>} : memref<128x128xf32, #tpu.memory_space<vmem>>, vector<32x128xf32>,
      %cst_15 = arith.constant 0.000000e+00 : f32
      %37 = vector.shape_cast %6 : vector<32x1xi1> to vector<32x1xi1>
      %38 = vector.broadcast %37 : vector<32x1xi1> to vector<32x128xi1>
      %39 = vector.broadcast %cst_15 : f32 to vector<32x128xf32>
      %40 = arith.select %38, %34, %39 : vector<32x128xi1>, vector<32x128xf32>
      %c0_16 = arith.constant 0 : index
      %c0_17 = arith.constant 0 : index
      %41 = vector.load %arg17[%c0_16, %c0_17] : memref<1x128xf32, #tpu.memory_space<vmem>>, vector<1x128xf32>
      %cst_18 = arith.constant dense<0.000000e+00> : vector<128xf32>
      %42 = vector.multi_reduction <add>, %40, %cst_18 [0] : vector<32x128xf32> to vector<128xf32>
      %43 = vector.shape_cast %42 : vector<128xf32> to vector<1x128xf32>
      %44 = arith.addf %41, %43 : vector<1x128xf32>
      %c0_19 = arith.constant 0 : index
      %c0_20 = arith.constant 0 : index
      %45 = vector.load %arg17[%c0_19, %c0_20] : memref<1x128xf32, #tpu.memory_space<vmem>>, vector<1x128xf32>
      tpu.vector_store %arg17[%c0_19, %c0_20], %44 {strides = array<i32>} : memref<1x128xf32, #tpu.memory_space<vmem>>, vector<1x128xf32>,
      %c0_21 = arith.constant 0 : index
      %c0_22 = arith.constant 0 : index
      %46 = vector.load %arg18[%c0_21, %c0_22] : memref<1x128xf32, #tpu.memory_space<vmem>>, vector<1x128xf32>
      %47 = arith.mulf %40, %40 : vector<32x128xf32>
      %cst_23 = arith.constant dense<0.000000e+00> : vector<128xf32>
      %48 = vector.multi_reduction <add>, %47, %cst_23 [0] : vector<32x128xf32> to vector<128xf32>
      %49 = vector.shape_cast %48 : vector<128xf32> to vector<1x128xf32>
      %50 = arith.addf %46, %49 : vector<1x128xf32>
      %c0_24 = arith.constant 0 : index
      %c0_25 = arith.constant 0 : index
      %51 = vector.load %arg18[%c0_24, %c0_25] : memref<1x128xf32, #tpu.memory_space<vmem>>, vector<1x128xf32>
      tpu.vector_store %arg18[%c0_24, %c0_25], %50 {strides = array<i32>} : memref<1x128xf32, #tpu.memory_space<vmem>>, vector<1x128xf32>,
    } else {
    }
    %c2_i32 = arith.constant 2 : i32
    %13 = arith.cmpi eq, %arg0, %c2_i32 : i32
    %14 = arith.extui %13 : i1 to i32
    %c0_i32_2 = arith.constant 0 : i32
    %15 = arith.cmpi ne, %14, %c0_i32_2 : i32
    scf.if %15 {
      %c0_i32_3 = arith.constant 0 : i32
      %16 = arith.cmpi eq, %arg1, %c0_i32_3 : i32
      %17 = arith.extui %16 : i1 to i32
      %c0_i32_4 = arith.constant 0 : i32
      %18 = arith.cmpi ne, %17, %c0_i32_4 : i32
      scf.if %18 {
        %c0_11 = arith.constant 0 : index
        %c0_12 = arith.constant 0 : index
        %30 = vector.load %arg17[%c0_11, %c0_12] : memref<1x128xf32, #tpu.memory_space<vmem>>, vector<1x128xf32>
        %cst_13 = arith.constant 8.620690e-03 : f32
        %31 = vector.broadcast %cst_13 : f32 to vector<1x128xf32>
        %32 = arith.mulf %30, %31 : vector<1x128xf32>
        %c0_14 = arith.constant 0 : index
        %c0_15 = arith.constant 0 : index
        %33 = vector.load %arg18[%c0_14, %c0_15] : memref<1x128xf32, #tpu.memory_space<vmem>>, vector<1x128xf32>
        %cst_16 = arith.constant 8.620690e-03 : f32
        %34 = vector.broadcast %cst_16 : f32 to vector<1x128xf32>
        %35 = arith.mulf %33, %34 : vector<1x128xf32>
        %36 = arith.mulf %32, %32 : vector<1x128xf32>
        %37 = arith.subf %35, %36 : vector<1x128xf32>
        %cst_17 = arith.constant 0.000000e+00 : f32
        %38 = vector.broadcast %cst_17 : f32 to vector<1x128xf32>
        %39 = arith.maximumf %37, %38 : vector<1x128xf32>
        %c0_18 = arith.constant 0 : index
        %c0_19 = arith.constant 0 : index
        %40 = vector.load %arg10[%c0_18, %c0_19] : memref<1x128xf32, #tpu.memory_space<vmem>>, vector<1x128xf32>
        %cst_20 = arith.constant 9.99999974E-6 : f32
        %41 = vector.broadcast %cst_20 : f32 to vector<1x128xf32>
        %42 = arith.addf %39, %41 : vector<1x128xf32>
        %43 = math.rsqrt %42 : vector<1x128xf32>
        %44 = arith.mulf %40, %43 : vector<1x128xf32>
        %c0_21 = arith.constant 0 : index
        %c0_22 = arith.constant 0 : index
        %45 = vector.load %arg17[%c0_21, %c0_22] : memref<1x128xf32, #tpu.memory_space<vmem>>, vector<1x128xf32>
        tpu.vector_store %arg17[%c0_21, %c0_22], %44 {strides = array<i32>} : memref<1x128xf32, #tpu.memory_space<vmem>>, vector<1x128xf32>,
        %c0_23 = arith.constant 0 : index
        %c0_24 = arith.constant 0 : index
        %46 = vector.load %arg11[%c0_23, %c0_24] : memref<1x128xf32, #tpu.memory_space<vmem>>, vector<1x128xf32>
        %47 = arith.mulf %32, %44 : vector<1x128xf32>
        %48 = arith.subf %46, %47 : vector<1x128xf32>
        %c0_25 = arith.constant 0 : index
        %c0_26 = arith.constant 0 : index
        %49 = vector.load %arg18[%c0_25, %c0_26] : memref<1x128xf32, #tpu.memory_space<vmem>>, vector<1x128xf32>
        tpu.vector_store %arg18[%c0_25, %c0_26], %48 {strides = array<i32>} : memref<1x128xf32, #tpu.memory_space<vmem>>, vector<1x128xf32>,
      } else {
      }
      %19 = arith.index_cast %1 : i32 to index
      %c0 = arith.constant 0 : index
      %20 = vector.load %arg14[%19, %c0] : memref<128x128xf32, #tpu.memory_space<vmem>>, vector<32x128xf32>
      %c0_5 = arith.constant 0 : index
      %c0_6 = arith.constant 0 : index
      %21 = vector.load %arg17[%c0_5, %c0_6] : memref<1x128xf32, #tpu.memory_space<vmem>>, vector<1x128xf32>
      %22 = vector.broadcast %21 : vector<1x128xf32> to vector<32x128xf32>
      %23 = arith.mulf %20, %22 : vector<32x128xf32>
      %c0_7 = arith.constant 0 : index
      %c0_8 = arith.constant 0 : index
      %24 = vector.load %arg18[%c0_7, %c0_8] : memref<1x128xf32, #tpu.memory_space<vmem>>, vector<1x128xf32>
      %25 = vector.broadcast %24 : vector<1x128xf32> to vector<32x128xf32>
      %26 = arith.addf %23, %25 : vector<32x128xf32>
      %cst = arith.constant 0.000000e+00 : f32
      %27 = vector.broadcast %cst : f32 to vector<32x128xf32>
      %28 = arith.maximumf %26, %27 : vector<32x128xf32>
      %c0_9 = arith.constant 0 : index
      %c0_10 = arith.constant 0 : index
      %29 = vector.load %arg12[%c0_9, %c0_10] : memref<32x128xf32, #tpu.memory_space<vmem>>, vector<32x128xf32>
      tpu.vector_store %arg12[%c0_9, %c0_10], %28 {strides = array<i32>} : memref<32x128xf32, #tpu.memory_space<vmem>>, vector<32x128xf32>,
    } else {
    }
    return
  }
  func.func @transform_0(%arg0: i32, %arg1: i32) -> (i32, i32) {
    %c0_i32 = arith.constant 0 : i32
    %0 = arith.cmpi eq, %arg0, %c0_i32 : i32
    %c3_i32 = arith.constant 3 : i32
    %1 = arith.select %0, %arg1, %c3_i32 : i32
    %c0_i32_0 = arith.constant 0 : i32
    %c0_i32_1 = arith.constant 0 : i32
    return %1, %c0_i32_0 : i32, i32
  }
  func.func @transform_1(%arg0: i32, %arg1: i32) -> (i32, i32) {
    %c0_i32 = arith.constant 0 : i32
    %c0_i32_0 = arith.constant 0 : i32
    %c0_i32_1 = arith.constant 0 : i32
    return %c0_i32, %c0_i32_0 : i32, i32
  }
  func.func @transform_2(%arg0: i32, %arg1: i32) -> (i32, i32) {
    %c0_i32 = arith.constant 0 : i32
    %c0_i32_0 = arith.constant 0 : i32
    %c0_i32_1 = arith.constant 0 : i32
    return %c0_i32, %c0_i32_0 : i32, i32
  }
  func.func @transform_3(%arg0: i32, %arg1: i32) -> (i32, i32) {
    %c0_i32 = arith.constant 0 : i32
    %c0_i32_0 = arith.constant 0 : i32
    %c0_i32_1 = arith.constant 0 : i32
    return %c0_i32, %c0_i32_0 : i32, i32
  }
  func.func @transform_4(%arg0: i32, %arg1: i32) -> (i32, i32) {
    %c0_i32 = arith.constant 0 : i32
    %c0_i32_0 = arith.constant 0 : i32
    %c0_i32_1 = arith.constant 0 : i32
    return %c0_i32, %c0_i32_0 : i32, i32
  }
  func.func @transform_5(%arg0: i32, %arg1: i32) -> (i32, i32) {
    %c0_i32 = arith.constant 0 : i32
    %c0_i32_0 = arith.constant 0 : i32
    %c0_i32_1 = arith.constant 0 : i32
    return %c0_i32, %c0_i32_0 : i32, i32
  }
  func.func @transform_6(%arg0: i32, %arg1: i32) -> (i32, i32) {
    %c0_i32 = arith.constant 0 : i32
    %c0_i32_0 = arith.constant 0 : i32
    %c0_i32_1 = arith.constant 0 : i32
    return %c0_i32, %c0_i32_0 : i32, i32
  }
  func.func @transform_7(%arg0: i32, %arg1: i32) -> (i32, i32) {
    %c0_i32 = arith.constant 0 : i32
    %c0_i32_0 = arith.constant 0 : i32
    %c0_i32_1 = arith.constant 0 : i32
    return %c0_i32, %c0_i32_0 : i32, i32
  }
  func.func @transform_8(%arg0: i32, %arg1: i32) -> (i32, i32) {
    %c0_i32 = arith.constant 0 : i32
    %c0_i32_0 = arith.constant 0 : i32
    %c0_i32_1 = arith.constant 0 : i32
    return %c0_i32, %c0_i32_0 : i32, i32
  }
  func.func @transform_9(%arg0: i32, %arg1: i32) -> (i32, i32) {
    %c0_i32 = arith.constant 0 : i32
    %c0_i32_0 = arith.constant 0 : i32
    %c0_i32_1 = arith.constant 0 : i32
    return %c0_i32, %c0_i32_0 : i32, i32
  }
  func.func @transform_10(%arg0: i32, %arg1: i32) -> (i32, i32) {
    %c2_i32 = arith.constant 2 : i32
    %0 = arith.cmpi eq, %arg0, %c2_i32 : i32
    %c0_i32 = arith.constant 0 : i32
    %1 = arith.select %0, %arg1, %c0_i32 : i32
    %c0_i32_0 = arith.constant 0 : i32
    %c0_i32_1 = arith.constant 0 : i32
    return %1, %c0_i32_0 : i32, i32
  }
}

</mosaic_0001>

<llo_original>
// kernel: tpu_custom_call.1
$region0: #{tpu_custom_call.1}
  #allocation0 [shape = 'u32[]', space=smem, size = 0x4, offset = 0x4, fixed_abs, tag = 'smem constant byte address 0x4 - core index']
  #allocation1 [shape = 'u32[144,128]{1,0:T(1,128)}', space=vmem, size = 0x12000, scoped, tag = 'internal scratch']
  #allocation2 [shape = 'f32[128,128]{1,0:T(8,128)}', space=vmem, size = 0x10000, scoped, tag = 'scratch operand']
  #allocation3 [shape = 'f32[128,128]{1,0:T(8,128)}', space=vmem, size = 0x10000, scoped, tag = 'scratch operand']
  #allocation4 [shape = 'f32[1,128]{1,0:T(1,128)}', space=vmem, size = 0x200, scoped, tag = 'scratch operand']
  #allocation5 [shape = 'f32[1,128]{1,0:T(1,128)}', space=vmem, size = 0x200, scoped, tag = 'scratch operand']
  #allocation6 [shape = 'f32[1,128]{1,0:T(1,128)}', space=vmem, size = 0x200, scoped, tag = 'scratch operand']
  #allocation7 [shape = 'f32[1,128]{1,0:T(1,128)}', space=vmem, size = 0x200, scoped, tag = 'scratch operand']
  %s0 = inlined_call_operand.hbm [shape: bf16[128,128], index: 0, kind: input, shape index: {}]
  %s1 = inlined_call_operand.hbm [shape: bf16[128,128], index: 1, kind: input, shape index: {}]
  %s2 = inlined_call_operand.hbm [shape: bf16[128,128], index: 2, kind: input, shape index: {}]
  %s3 = inlined_call_operand.vmem [shape: f32[1,128], index: 3, kind: input, shape index: {}]
  %s4 = inlined_call_operand.vmem [shape: f32[1,128], index: 4, kind: input, shape index: {}]
  %s5 = inlined_call_operand.vmem [shape: f32[1,128], index: 5, kind: input, shape index: {}]
  %s6 = inlined_call_operand.hbm [shape: bf16[128,128], index: 6, kind: input, shape index: {}]
  %s7 = inlined_call_operand.vmem [shape: f32[1,128], index: 7, kind: input, shape index: {}]
  %s8 = inlined_call_operand.vmem [shape: f32[1,128], index: 8, kind: input, shape index: {}]
  %s9 = inlined_call_operand.vmem [shape: f32[1,128], index: 9, kind: input, shape index: {}]
  %s10 = inlined_call_operand.hbm [shape: f32[128,128], index: 10, kind: output, shape index: {}]
  %s11 = sld [smem:[#allocation0]]
  $region113: #{tpu_custom_call.1} parent=0
    _
  %s13 = ssub.s32 1, %s11
  %s14 = scalar_select 0, %s13, %s11
  $region1: #{tpu_custom_call.1} parent=0
    #allocation8 [shape = 'u8[16384]{0}', space=vmem, size = 0x4000, scoped, tag = 'input window, operand 0']
    #allocation9 [shape = 's32[2]{0}', space=sflag, size = 0x8, scoped, tag = 'scoped memory for tpu_custom_call.1']
    #allocation10 [shape = 's32[2]{0}', space=sflag, size = 0x8, scoped, tag = 'scoped memory for tpu_custom_call.1']
    #allocation11 [shape = 'u8[32768]{0}', space=vmem, size = 0x8000, scoped, tag = 'input window, operand 1, single buffered']
    #allocation12 [shape = 's32[1]{0}', space=sflag, size = 0x4, scoped, tag = 'scoped memory for tpu_custom_call.1']
    #allocation13 [shape = 'u8[32768]{0}', space=vmem, size = 0x8000, scoped, tag = 'input window, operand 2, single buffered']
    #allocation14 [shape = 'u8[32768]{0}', space=vmem, size = 0x8000, scoped, tag = 'input window, operand 6, single buffered']
    #allocation15 [shape = 's32[1]{0}', space=sflag, size = 0x4, scoped, tag = 'scoped memory for tpu_custom_call.1']
    #allocation16 [shape = 'u8[32768]{0}', space=vmem, size = 0x8000, scoped, tag = 'output window, operand 0']
    %15 = vsyncpa [#allocation9], 0
    %s16 = scalar_lea.sflag [#allocation9], 1
    %17 = vsyncpa %s16, 0
    %18 = vsyncpa [#allocation12], 0
    %19 = vsyncpa [#allocation15], 0
    %20 = vsyncpa [#allocation10], 0
    %s21 = scalar_lea.sflag [#allocation10], 1
    %22 = vsyncpa %s21, 0
    loop: start=0, step=1, limit=14
    $region2: #{tpu_custom_call.1} parent=1 // loop_pre_header
      _
    $region3: #{tpu_custom_call.1} parent=1 // loop_header
      %s24 = sphi 0, %s28
      %p25 = scmp.ge.s32.totalorder %s24, 14
      %s31 = sphi 0, %s43
      %s32 = sphi 0, %s39
      %s33 = sphi 0, %s31
      %s34 = sphi 0, %s32
      %s35 = sphi 0, %s33
      %s36 = sphi 0, %s34
      %s50 = sphi 0, %s52
      %s53 = sphi 0, %s50
      %s54 = sphi 0, %s53
      %s70 = sphi 0, %s54
      %s74 = sphi 0, %s74
      %s76 = sphi 0, %s74
      %s77 = sphi 0, %s76
      %s91 = sphi 0, %s77
      %s95 = sphi 0, %s95
      %s97 = sphi 0, %s95
      %s98 = sphi 0, %s97
      %s112 = sphi 0, %s98
      %s116 = sphi 0, %s116
      %s118 = sphi 0, %s116
      %s119 = sphi 0, %s118
      %s133 = sphi 0, %s119
      %s137 = sphi 0, %s137
      %s139 = sphi 0, %s137
      %s140 = sphi 0, %s139
      %s154 = sphi 0, %s140
      %s158 = sphi 0, %s158
      %s160 = sphi 0, %s158
      %s161 = sphi 0, %s160
      %s175 = sphi 0, %s161
      %s179 = sphi 0, %s179
      %s181 = sphi 0, %s179
      %s182 = sphi 0, %s181
      %s196 = sphi 0, %s182
      %s200 = sphi 0, %s200
      %s202 = sphi 0, %s200
      %s203 = sphi 0, %s202
      %s217 = sphi 0, %s203
      %s221 = sphi 0, %s221
      %s223 = sphi 0, %s221
      %s224 = sphi 0, %s223
      %s238 = sphi 0, %s224
      %s242 = sphi 0, %s242
      %s244 = sphi 0, %s242
      %s245 = sphi 0, %s244
      %s259 = sphi 0, %s245
      %s269 = sphi 0, %s271
      %s272 = sphi 0, %s269
      %s273 = sphi 0, %s272
      %s289 = sphi 0, %s273
    $region4: #{tpu_custom_call.1} parent=1 // loop_header_branch
      %27 = sbr.rel (%p25) target = $region8
    $region5: #{tpu_custom_call.1} parent=1 // loop_body
      %s29 = ssub.s32 %s24, 1
      %s30 = ssub.s32 %s24, 2
      %s37 = sadd.s32 1, %s32
      %p38 = scmp.ge.s32.totalorder %s37, 4
      %s39 = scalar_select %p38, 0, %s37
      %s40 = sadd.s32 1, %s31
      %s41 = scalar_select %p38, %s40, %s31
      %p42 = scmp.ge.s32.totalorder %s41, 3
      %s43 = scalar_select %p42, 0, %s41
      %p44 = scmp.eq.s32.totalorder %s31, 0
      %s45 = scalar_select %p44, %s32, 3
      %p46 = scmp.eq.s32.totalorder %s43, 0
      %s47 = scalar_select %p46, %s39, 3
      %s48 = ssub.s32 %s45, %s47
      %p49 = scmp.eq.s32.totalorder %s48, 0
      %s51 = sadd.s32 %s50, 1
      %s52 = scalar_select %p49, %s50, %s51
      %p55 = pneg %p49
      %p56 = scmp.eq.s32.totalorder %s24, 11
      %p57 = por %p55, %p56
      %p58 = scmp.ne.s32.totalorder %s50, %s53
      %p59 = scmp.eq.s32.totalorder %s24, 0
      %p60 = por %p58, %p59
      %p61 = scmp.ne.s32.totalorder %s50, %s53
      %p62 = scmp.eq.s32.totalorder %s29, 11
      %p63 = por %p61, %p62
      %p64 = scmp.ne.s32.totalorder %s53, %s54
      %p65 = scmp.eq.s32.totalorder %s29, 0
      %p66 = por %p64, %p65
      %p67 = scmp.ne.s32.totalorder %s53, %s54
      %p68 = scmp.eq.s32.totalorder %s30, 11
      %p69 = por %p67, %p68
      %p71 = scmp.ne.s32.totalorder %s54, %s70
      %p72 = scmp.eq.s32.totalorder %s30, 0
      %p73 = por %p71, %p72
      %s75 = sadd.s32 %s74, 1
      %p78 = scmp.eq.s32.totalorder %s24, 11
      %p79 = scmp.ne.s32.totalorder %s74, %s76
      %p80 = scmp.eq.s32.totalorder %s24, 0
      %p81 = por %p79, %p80
      %p82 = scmp.ne.s32.totalorder %s74, %s76
      %p83 = scmp.eq.s32.totalorder %s29, 11
      %p84 = por %p82, %p83
      %p85 = scmp.ne.s32.totalorder %s76, %s77
      %p86 = scmp.eq.s32.totalorder %s29, 0
      %p87 = por %p85, %p86
      %p88 = scmp.ne.s32.totalorder %s76, %s77
      %p89 = scmp.eq.s32.totalorder %s30, 11
      %p90 = por %p88, %p89
      %p92 = scmp.ne.s32.totalorder %s77, %s91
      %p93 = scmp.eq.s32.totalorder %s30, 0
      %p94 = por %p92, %p93
      %s96 = sadd.s32 %s95, 1
      %p99 = scmp.eq.s32.totalorder %s24, 11
      %p100 = scmp.ne.s32.totalorder %s95, %s97
      %p101 = scmp.eq.s32.totalorder %s24, 0
      %p102 = por %p100, %p101
      %p103 = scmp.ne.s32.totalorder %s95, %s97
      %p104 = scmp.eq.s32.totalorder %s29, 11
      %p105 = por %p103, %p104
      %p106 = scmp.ne.s32.totalorder %s97, %s98
      %p107 = scmp.eq.s32.totalorder %s29, 0
      %p108 = por %p106, %p107
      %p109 = scmp.ne.s32.totalorder %s97, %s98
      %p110 = scmp.eq.s32.totalorder %s30, 11
      %p111 = por %p109, %p110
      %p113 = scmp.ne.s32.totalorder %s98, %s112
      %p114 = scmp.eq.s32.totalorder %s30, 0
      %p115 = por %p113, %p114
      %s117 = sadd.s32 %s116, 1
      %p120 = scmp.eq.s32.totalorder %s24, 11
      %p121 = scmp.ne.s32.totalorder %s116, %s118
      %p122 = scmp.eq.s32.totalorder %s24, 0
      %p123 = por %p121, %p122
      %p124 = scmp.ne.s32.totalorder %s116, %s118
      %p125 = scmp.eq.s32.totalorder %s29, 11
      %p126 = por %p124, %p125
      %p127 = scmp.ne.s32.totalorder %s118, %s119
      %p128 = scmp.eq.s32.totalorder %s29, 0
      %p129 = por %p127, %p128
      %p130 = scmp.ne.s32.totalorder %s118, %s119
      %p131 = scmp.eq.s32.totalorder %s30, 11
      %p132 = por %p130, %p131
      %p134 = scmp.ne.s32.totalorder %s119, %s133
      %p135 = scmp.eq.s32.totalorder %s30, 0
      %p136 = por %p134, %p135
      %s138 = sadd.s32 %s137, 1
      %p141 = scmp.eq.s32.totalorder %s24, 11
      %p142 = scmp.ne.s32.totalorder %s137, %s139
      %p143 = scmp.eq.s32.totalorder %s24, 0
      %p144 = por %p142, %p143
      %p145 = scmp.ne.s32.totalorder %s137, %s139
      %p146 = scmp.eq.s32.totalorder %s29, 11
      %p147 = por %p145, %p146
      %p148 = scmp.ne.s32.totalorder %s139, %s140
      %p149 = scmp.eq.s32.totalorder %s29, 0
      %p150 = por %p148, %p149
      %p151 = scmp.ne.s32.totalorder %s139, %s140
      %p152 = scmp.eq.s32.totalorder %s30, 11
      %p153 = por %p151, %p152
      %p155 = scmp.ne.s32.totalorder %s140, %s154
      %p156 = scmp.eq.s32.totalorder %s30, 0
      %p157 = por %p155, %p156
      %s159 = sadd.s32 %s158, 1
      %p162 = scmp.eq.s32.totalorder %s24, 11
      %p163 = scmp.ne.s32.totalorder %s158, %s160
      %p164 = scmp.eq.s32.totalorder %s24, 0
      %p165 = por %p163, %p164
      %p166 = scmp.ne.s32.totalorder %s158, %s160
      %p167 = scmp.eq.s32.totalorder %s29, 11
      %p168 = por %p166, %p167
      %p169 = scmp.ne.s32.totalorder %s160, %s161
      %p170 = scmp.eq.s32.totalorder %s29, 0
      %p171 = por %p169, %p170
      %p172 = scmp.ne.s32.totalorder %s160, %s161
      %p173 = scmp.eq.s32.totalorder %s30, 11
      %p174 = por %p172, %p173
      %p176 = scmp.ne.s32.totalorder %s161, %s175
      %p177 = scmp.eq.s32.totalorder %s30, 0
      %p178 = por %p176, %p177
      %s180 = sadd.s32 %s179, 1
      %p183 = scmp.eq.s32.totalorder %s24, 11
      %p184 = scmp.ne.s32.totalorder %s179, %s181
      %p185 = scmp.eq.s32.totalorder %s24, 0
      %p186 = por %p184, %p185
      %p187 = scmp.ne.s32.totalorder %s179, %s181
      %p188 = scmp.eq.s32.totalorder %s29, 11
      %p189 = por %p187, %p188
      %p190 = scmp.ne.s32.totalorder %s181, %s182
      %p191 = scmp.eq.s32.totalorder %s29, 0
      %p192 = por %p190, %p191
      %p193 = scmp.ne.s32.totalorder %s181, %s182
      %p194 = scmp.eq.s32.totalorder %s30, 11
      %p195 = por %p193, %p194
      %p197 = scmp.ne.s32.totalorder %s182, %s196
      %p198 = scmp.eq.s32.totalorder %s30, 0
      %p199 = por %p197, %p198
      %s201 = sadd.s32 %s200, 1
      %p204 = scmp.eq.s32.totalorder %s24, 11
      %p205 = scmp.ne.s32.totalorder %s200, %s202
      %p206 = scmp.eq.s32.totalorder %s24, 0
      %p207 = por %p205, %p206
      %p208 = scmp.ne.s32.totalorder %s200, %s202
      %p209 = scmp.eq.s32.totalorder %s29, 11
      %p210 = por %p208, %p209
      %p211 = scmp.ne.s32.totalorder %s202, %s203
      %p212 = scmp.eq.s32.totalorder %s29, 0
      %p213 = por %p211, %p212
      %p214 = scmp.ne.s32.totalorder %s202, %s203
      %p215 = scmp.eq.s32.totalorder %s30, 11
      %p216 = por %p214, %p215
      %p218 = scmp.ne.s32.totalorder %s203, %s217
      %p219 = scmp.eq.s32.totalorder %s30, 0
      %p220 = por %p218, %p219
      %s222 = sadd.s32 %s221, 1
      %p225 = scmp.eq.s32.totalorder %s24, 11
      %p226 = scmp.ne.s32.totalorder %s221, %s223
      %p227 = scmp.eq.s32.totalorder %s24, 0
      %p228 = por %p226, %p227
      %p229 = scmp.ne.s32.totalorder %s221, %s223
      %p230 = scmp.eq.s32.totalorder %s29, 11
      %p231 = por %p229, %p230
      %p232 = scmp.ne.s32.totalorder %s223, %s224
      %p233 = scmp.eq.s32.totalorder %s29, 0
      %p234 = por %p232, %p233
      %p235 = scmp.ne.s32.totalorder %s223, %s224
      %p236 = scmp.eq.s32.totalorder %s30, 11
      %p237 = por %p235, %p236
      %p239 = scmp.ne.s32.totalorder %s224, %s238
      %p240 = scmp.eq.s32.totalorder %s30, 0
      %p241 = por %p239, %p240
      %s243 = sadd.s32 %s242, 1
      %p246 = scmp.eq.s32.totalorder %s24, 11
      %p247 = scmp.ne.s32.totalorder %s242, %s244
      %p248 = scmp.eq.s32.totalorder %s24, 0
      %p249 = por %p247, %p248
      %p250 = scmp.ne.s32.totalorder %s242, %s244
      %p251 = scmp.eq.s32.totalorder %s29, 11
      %p252 = por %p250, %p251
      %p253 = scmp.ne.s32.totalorder %s244, %s245
      %p254 = scmp.eq.s32.totalorder %s29, 0
      %p255 = por %p253, %p254
      %p256 = scmp.ne.s32.totalorder %s244, %s245
      %p257 = scmp.eq.s32.totalorder %s30, 11
      %p258 = por %p256, %p257
      %p260 = scmp.ne.s32.totalorder %s245, %s259
      %p261 = scmp.eq.s32.totalorder %s30, 0
      %p262 = por %p260, %p261
      %p263 = scmp.eq.s32.totalorder %s31, 2
      %s264 = scalar_select %p263, %s32, 0
      %p265 = scmp.eq.s32.totalorder %s43, 2
      %s266 = scalar_select %p265, %s39, 0
      %s267 = ssub.s32 %s264, %s266
      %p268 = scmp.eq.s32.totalorder %s267, 0
      %s270 = sadd.s32 %s269, 1
      %s271 = scalar_select %p268, %s269, %s270
      %p274 = pneg %p268
      %p275 = scmp.eq.s32.totalorder %s24, 11
      %p276 = por %p274, %p275
      %p277 = scmp.ne.s32.totalorder %s269, %s272
      %p278 = scmp.eq.s32.totalorder %s24, 0
      %p279 = por %p277, %p278
      %p280 = scmp.ne.s32.totalorder %s269, %s272
      %p281 = scmp.eq.s32.totalorder %s29, 11
      %p282 = por %p280, %p281
      %p283 = scmp.ne.s32.totalorder %s272, %s273
      %p284 = scmp.eq.s32.totalorder %s29, 0
      %p285 = por %p283, %p284
      %p286 = scmp.ne.s32.totalorder %s272, %s273
      %p287 = scmp.eq.s32.totalorder %s30, 11
      %p288 = por %p286, %p287
      %p290 = scmp.ne.s32.totalorder %s273, %s289
      %p291 = scmp.eq.s32.totalorder %s30, 0
      %p292 = por %p290, %p291
      %p293 = scmp.le.s32.totalorder 1, %s24
      %p294 = scmp.lt.s32.totalorder %s24, 13
      %p295 = pnand %p293, %p294
      %p296 = pneg %p295
      // Predicated region
      $region9: #{tpu_custom_call.1} parent=5 // pred_check
        _
      $region10: #{tpu_custom_call.1} parent=5 // pred_check_branch
        %298 = sbr.rel (%p295) target = $region12
      $region11: #{tpu_custom_call.1} parent=5 // pred_region
        %s299 = ssub.s32 %s24, 1
        // Predicated region
        $region13: #{tpu_custom_call.1} parent=11 // pred_check
          %p300 = pneg %p87
        $region14: #{tpu_custom_call.1} parent=11 // pred_check_branch
          %302 = sbr.rel (%p300) target = $region16
        $region15: #{tpu_custom_call.1} parent=11 // pred_region
          %s304 = ssub.s32 1024, 1024
          %305 = vsyncadd [#allocation12], %s304
          %s306 = sshll.u32 [#allocation11], 4
          %s307 = int_to_ptr.vmem [resolvable:$true] %s306
          %312 = dma.hbm_to_vmem [thread:$0]  %s1, 1024, %s307, [#allocation12], 64, 64, 4
        $region16: #{tpu_custom_call.1} parent=11 // pred_fallthru
          _
        // Predicated region
        $region17: #{tpu_custom_call.1} parent=11 // pred_check
          %p313 = pneg %p108
        $region18: #{tpu_custom_call.1} parent=11 // pred_check_branch
          %315 = sbr.rel (%p313) target = $region20
        $region19: #{tpu_custom_call.1} parent=11 // pred_region
          %s317 = ssub.s32 1024, 1024
          %318 = vsyncadd [#allocation12], %s317
          %s319 = sshll.u32 [#allocation13], 4
          %s320 = int_to_ptr.vmem [resolvable:$true] %s319
          %325 = dma.hbm_to_vmem [thread:$0]  %s2, 1024, %s320, [#allocation12], 64, 64, 4
        $region20: #{tpu_custom_call.1} parent=11 // pred_fallthru
          _
        // Predicated region
        $region21: #{tpu_custom_call.1} parent=11 // pred_check
          %p326 = pneg %p129
        $region22: #{tpu_custom_call.1} parent=11 // pred_check_branch
          %328 = sbr.rel (%p326) target = $region24
        $region23: #{tpu_custom_call.1} parent=11 // pred_region
          _
        $region24: #{tpu_custom_call.1} parent=11 // pred_fallthru
          _
        // Predicated region
        $region25: #{tpu_custom_call.1} parent=11 // pred_check
          %p329 = pneg %p150
        $region26: #{tpu_custom_call.1} parent=11 // pred_check_branch
          %331 = sbr.rel (%p329) target = $region28
        $region27: #{tpu_custom_call.1} parent=11 // pred_region
          _
        $region28: #{tpu_custom_call.1} parent=11 // pred_fallthru
          _
        // Predicated region
        $region29: #{tpu_custom_call.1} parent=11 // pred_check
          %p332 = pneg %p171
        $region30: #{tpu_custom_call.1} parent=11 // pred_check_branch
          %334 = sbr.rel (%p332) target = $region32
        $region31: #{tpu_custom_call.1} parent=11 // pred_region
          _
        $region32: #{tpu_custom_call.1} parent=11 // pred_fallthru
          _
        // Predicated region
        $region33: #{tpu_custom_call.1} parent=11 // pred_check
          %p335 = pneg %p192
        $region34: #{tpu_custom_call.1} parent=11 // pred_check_branch
          %337 = sbr.rel (%p335) target = $region36
        $region35: #{tpu_custom_call.1} parent=11 // pred_region
          %s339 = ssub.s32 1024, 1024
          %340 = vsyncadd [#allocation15], %s339
          %s341 = sshll.u32 [#allocation14], 4
          %s342 = int_to_ptr.vmem [resolvable:$true] %s341
          %347 = dma.hbm_to_vmem [thread:$0]  %s6, 1024, %s342, [#allocation15], 64, 64, 4
        $region36: #{tpu_custom_call.1} parent=11 // pred_fallthru
          _
        // Predicated region
        $region37: #{tpu_custom_call.1} parent=11 // pred_check
          %p348 = pneg %p213
        $region38: #{tpu_custom_call.1} parent=11 // pred_check_branch
          %350 = sbr.rel (%p348) target = $region40
        $region39: #{tpu_custom_call.1} parent=11 // pred_region
          _
        $region40: #{tpu_custom_call.1} parent=11 // pred_fallthru
          _
        // Predicated region
        $region41: #{tpu_custom_call.1} parent=11 // pred_check
          %p351 = pneg %p234
        $region42: #{tpu_custom_call.1} parent=11 // pred_check_branch
          %353 = sbr.rel (%p351) target = $region44
        $region43: #{tpu_custom_call.1} parent=11 // pred_region
          _
        $region44: #{tpu_custom_call.1} parent=11 // pred_fallthru
          _
        // Predicated region
        $region45: #{tpu_custom_call.1} parent=11 // pred_check
          %p354 = pneg %p255
        $region46: #{tpu_custom_call.1} parent=11 // pred_check_branch
          %356 = sbr.rel (%p354) target = $region48
        $region47: #{tpu_custom_call.1} parent=11 // pred_region
          _
        $region48: #{tpu_custom_call.1} parent=11 // pred_fallthru
          _
      $region12: #{tpu_custom_call.1} parent=5 // pred_fallthru
        _
      %p357 = scmp.lt.s32.totalorder %s24, 12
      // Predicated region
      $region49: #{tpu_custom_call.1} parent=5 // pred_check
        %p358 = pneg %p357
      $region50: #{tpu_custom_call.1} parent=5 // pred_check_branch
        %360 = sbr.rel (%p358) target = $region52
      $region51: #{tpu_custom_call.1} parent=5 // pred_region
        // Predicated region
        $region53: #{tpu_custom_call.1} parent=51 // pred_check
          %p361 = pneg %p60
        $region54: #{tpu_custom_call.1} parent=51 // pred_check_branch
          %363 = sbr.rel (%p361) target = $region56
        $region55: #{tpu_custom_call.1} parent=51 // pred_region
          %s364 = sand.u32 %s50, 1
          %s365 = scalar_lea.sflag [#allocation9], %s364
          %s366 = sand.u32 %s50, 1
          %s367 = smul.addr %s366, 16
          %s368 = scalar_lea.vmem [#allocation8], %s367
          %p369 = scmp.eq.s32.totalorder %s31, 0
          %s370 = scalar_select %p369, %s32, 3
          %s371 = smul.u32 4, %s370
          %s373 = ssub.s32 256, 256
          %374 = vsyncadd %s365, %s373
          %s375 = smul.addr %s371, 64
          %s376 = scalar_lea.hbm %s0, %s375
          %s377 = sshll.u32 %s368, 4
          %s378 = int_to_ptr.vmem [resolvable:$true] %s377
          %383 = dma.hbm_to_vmem [thread:$0]  %s376, 256, %s378, %s365, 64, 64, 4
        $region56: #{tpu_custom_call.1} parent=51 // pred_fallthru
          _
      $region52: #{tpu_custom_call.1} parent=5 // pred_fallthru
        _
      %p384 = scmp.le.s32.totalorder 1, %s24
      %p385 = scmp.lt.s32.totalorder %s24, 13
      %p386 = pnand %p384, %p385
      %p387 = pneg %p386
      // Predicated region
      $region57: #{tpu_custom_call.1} parent=5 // pred_check
        _
      $region58: #{tpu_custom_call.1} parent=5 // pred_check_branch
        %389 = sbr.rel (%p386) target = $region60
      $region59: #{tpu_custom_call.1} parent=5 // pred_region
        %s390 = ssub.s32 %s24, 1
        %s391 = sand.u32 %s53, 1
        %s392 = scalar_lea.sflag [#allocation9], %s391
        %s393 = sand.u32 %s53, 1
        %s394 = smul.addr %s393, 16
        %s395 = scalar_lea.vmem [#allocation8], %s394
        // Predicated region
        $region61: #{tpu_custom_call.1} parent=59 // pred_check
          %p396 = pneg %p66
        $region62: #{tpu_custom_call.1} parent=59 // pred_check_branch
          %398 = sbr.rel (%p396) target = $region64
        $region63: #{tpu_custom_call.1} parent=59 // pred_region
          %399 = dma.done %s392, 256
        $region64: #{tpu_custom_call.1} parent=59 // pred_fallthru
          _
        // Predicated region
        $region65: #{tpu_custom_call.1} parent=59 // pred_check
          %p400 = pneg %p87
        $region66: #{tpu_custom_call.1} parent=59 // pred_check_branch
          %402 = sbr.rel (%p400) target = $region68
        $region67: #{tpu_custom_call.1} parent=59 // pred_region
          %403 = dma.done [#allocation12], 1024
        $region68: #{tpu_custom_call.1} parent=59 // pred_fallthru
          _
        // Predicated region
        $region69: #{tpu_custom_call.1} parent=59 // pred_check
          %p404 = pneg %p108
        $region70: #{tpu_custom_call.1} parent=59 // pred_check_branch
          %406 = sbr.rel (%p404) target = $region72
        $region71: #{tpu_custom_call.1} parent=59 // pred_region
          %407 = dma.done [#allocation12], 1024
        $region72: #{tpu_custom_call.1} parent=59 // pred_fallthru
          _
        // Predicated region
        $region73: #{tpu_custom_call.1} parent=59 // pred_check
          %p408 = pneg %p192
        $region74: #{tpu_custom_call.1} parent=59 // pred_check_branch
          %410 = sbr.rel (%p408) target = $region76
        $region75: #{tpu_custom_call.1} parent=59 // pred_region
          %411 = dma.done [#allocation15], 1024
        $region76: #{tpu_custom_call.1} parent=59 // pred_fallthru
          _
        %s412 = sand.u32 %s53, 1
        %s413 = scalar_lea.sflag [#allocation9], %s412
        %s414 = sand.u32 %s53, 1
        %s415 = smul.addr %s414, 16
        %s416 = scalar_lea.vmem [#allocation8], %s415
        %p417 = pneg %p66
        %p418 = pneg %p63
        %p419 = pneg %p87
        %p420 = pneg %p84
        %p421 = pneg %p108
        %p422 = pneg %p105
        %p423 = pneg %p129
        %p424 = pneg %p126
        %p425 = pneg %p150
        %p426 = pneg %p147
        %p427 = pneg %p171
        %p428 = pneg %p168
        %p429 = pneg %p192
        %p430 = pneg %p189
        %p431 = pneg %p213
        %p432 = pneg %p210
        %p433 = pneg %p234
        %p434 = pneg %p231
        %p435 = pneg %p255
        %p436 = pneg %p252
        %p437 = pneg %p285
        %p438 = pneg %p282
        %s439 = sand.u32 %s272, 1
        %s440 = scalar_lea.sflag [#allocation10], %s439
        %s441 = sand.u32 %s272, 1
        %s442 = smul.addr %s441, 32
        %s443 = scalar_lea.vmem [#allocation16], %s442
        %p444 = scmp.eq.s32.totalorder %s33, 0
        %s445 = scalar_select %p444, %s34, 3
        %s446 = smul.u32 4, %s445
        %p447 = scmp.eq.s32.totalorder %s33, 2
        %s448 = scalar_select %p447, %s34, 0
        %s449 = smul.u32 4, %s448
        %s451 = smul.u32 %s34, 32
        %v452 = vlaneseq
        %v453 = vshrl.u32 %v452, 7
        %v454 = vadd.s32 %v453, 8
        %v455 = vadd.s32 %v453, 16
        %v456 = vadd.s32 %v453, 24
        %v457 = vstv %s451
        %v458 = vadd.s32 %v457, %v453
        %v459 = vadd.s32 %v457, %v454
        %v460 = vadd.s32 %v457, %v455
        %v461 = vadd.s32 %v457, %v456
        %vm462 = vcmp.lt.s32.totalorder %v458, 116
        %vm463 = vcmp.lt.s32.totalorder %v459, 116
        %vm464 = vcmp.lt.s32.totalorder %v460, 116
        %vm465 = vcmp.lt.s32.totalorder %v461, 116
        %p466 = scmp.eq.s32.totalorder %s33, 0
        // Predicated region
        $region77: #{tpu_custom_call.1} parent=59 // pred_check
          %p467 = pneg %p466
        $region78: #{tpu_custom_call.1} parent=59 // pred_check_branch
          %469 = sbr.rel (%p467) target = $region80
        $region79: #{tpu_custom_call.1} parent=59 // pred_region
          %p470 = scmp.eq.s32.totalorder %s34, 0
          // Predicated region
          $region81: #{tpu_custom_call.1} parent=79 // pred_check
            %p471 = pneg %p470
          $region82: #{tpu_custom_call.1} parent=79 // pred_check_branch
            %473 = sbr.rel (%p471) target = $region84
          $region83: #{tpu_custom_call.1} parent=79 // pred_region
            %474 = vst [vmem:[#allocation4] sm:$0x1] 0.0
            %475 = vst [vmem:[#allocation5] sm:$0x1] 0.0
            %476 = vst [vmem:[#allocation6] sm:$0x1] 0.0
            %477 = vst [vmem:[#allocation7] sm:$0x1] 0.0
          $region84: #{tpu_custom_call.1} parent=79 // pred_fallthru
            _
          %v478 = vld [vmem:[%s395] sm:$0xf]
          %v479 = vld [vmem:[%s395 + $0x4] sm:$0xf]
          %v480 = vld [vmem:[%s395 + $0x8] sm:$0xf]
          %v481 = vld [vmem:[%s395 + $0xc] sm:$0xf]
          %v482 = vld [vmem:[#allocation11] sm:$0xf]
          %v483 = vld [vmem:[#allocation11 + $0x4] sm:$0xf]
          %v484 = vld [vmem:[#allocation11 + $0x8] sm:$0xf]
          %v485 = vld [vmem:[#allocation11 + $0xc] sm:$0xf]
          %v486 = vld [vmem:[#allocation11 + $0x10] sm:$0xf]
          %v487 = vld [vmem:[#allocation11 + $0x14] sm:$0xf]
          %v488 = vld [vmem:[#allocation11 + $0x18] sm:$0xf]
          %v489 = vld [vmem:[#allocation11 + $0x1c] sm:$0xf]
          %v490 = vld [vmem:[#allocation11 + $0x20] sm:$0xf]
          %v491 = vld [vmem:[#allocation11 + $0x24] sm:$0xf]
          %v492 = vld [vmem:[#allocation11 + $0x28] sm:$0xf]
          %v493 = vld [vmem:[#allocation11 + $0x2c] sm:$0xf]
          %v494 = vld [vmem:[#allocation11 + $0x30] sm:$0xf]
          %v495 = vld [vmem:[#allocation11 + $0x34] sm:$0xf]
          %v496 = vld [vmem:[#allocation11 + $0x38] sm:$0xf]
          %v497 = vld [vmem:[#allocation11 + $0x3c] sm:$0xf]
          %v502 = vunpack.c.l.b16 %v478
          %v503 = vunpack.c.l.b16 %v479
          %v504 = vunpack.c.l.b16 %v480
          %v505 = vunpack.c.l.b16 %v481
          %v506 = vpack.c.b16 %v503, %v502
          %v507 = vpack.c.b16 %v505, %v504
          %v526 = vunpack.c.l.b16 %v482
          %v527 = vunpack.c.l.b16 %v483
          %v528 = vunpack.c.l.b16 %v484
          %v529 = vunpack.c.l.b16 %v485
          %v530 = vunpack.c.l.b16 %v486
          %v531 = vunpack.c.l.b16 %v487
          %v532 = vunpack.c.l.b16 %v488
          %v533 = vunpack.c.l.b16 %v489
          %v534 = vunpack.c.l.b16 %v490
          %v535 = vunpack.c.l.b16 %v491
          %v536 = vunpack.c.l.b16 %v492
          %v537 = vunpack.c.l.b16 %v493
          %v538 = vunpack.c.l.b16 %v494
          %v539 = vunpack.c.l.b16 %v495
          %v540 = vunpack.c.l.b16 %v496
          %v541 = vunpack.c.l.b16 %v497
          %v542 = vpack.c.b16 %v527, %v526
          %v543 = vpack.c.b16 %v529, %v528
          %v544 = vpack.c.b16 %v531, %v530
          %v545 = vpack.c.b16 %v533, %v532
          %v546 = vpack.c.b16 %v535, %v534
          %v547 = vpack.c.b16 %v537, %v536
          %v548 = vpack.c.b16 %v539, %v538
          %v549 = vpack.c.b16 %v541, %v540
          %558 = vmatprep.subr.bf16.mxu0 0
          %559 = vmatpush1.bf16.msra.mxu0 %v542
          %560 = vmatprep.subr.bf16.mxu0 0
          %561 = vmatpush1.bf16.msra.mxu0 %v543
          %562 = vmatprep.subr.bf16.mxu0 0
          %563 = vmatpush1.bf16.msra.mxu0 %v544
          %564 = vmatprep.subr.bf16.mxu0 0
          %565 = vmatpush1.bf16.msra.mxu0 %v545
          %566 = vmatprep.subr.bf16.mxu0 0
          %567 = vmatpush1.bf16.msra.mxu0 %v546
          %568 = vmatprep.subr.bf16.mxu0 0
          %569 = vmatpush1.bf16.msra.mxu0 %v547
          %570 = vmatprep.subr.bf16.mxu0 0
          %571 = vmatpush1.bf16.msra.mxu0 %v548
          %572 = vmatprep.subr.bf16.mxu0 0
          %573 = vmatpush1.bf16.msra.mxu0 %v549
          %574 = vmatprep.subr.bf16.mxu0 0
          %575 = vmatpush1.bf16.msra.mxu0 0
          %576 = vmatprep.subr.bf16.mxu0 0
          %577 = vmatpush1.bf16.msra.mxu0 0
          %578 = vmatprep.subr.bf16.mxu0 0
          %579 = vmatpush1.bf16.msra.mxu0 0
          %580 = vmatprep.subr.bf16.mxu0 0
          %581 = vmatpush1.bf16.msra.mxu0 0
          %582 = vmatprep.subr.bf16.mxu0 0
          %583 = vmatpush1.bf16.msra.mxu0 0
          %584 = vmatprep.subr.bf16.mxu0 0
          %585 = vmatpush1.bf16.msra.mxu0 0
          %586 = vmatprep.subr.bf16.mxu0 0
          %587 = vmatpush1.bf16.msra.mxu0 0
          %588 = vmatprep.subr.bf16.mxu0 0
          %589 = vmatpush1.bf16.msra.mxu0 0
          %590 = vmatprep.mubr.bf16.mxu0 0
          %591 = vmatmul.mubr.bf16.gmra.mrb[0].mxu0 %v506
          %v592 = vpop.f32.mrb[0].mxu0
          %v593 = vadd.f32 0.0, %v592
          %v594 = vpop.f32.mrb[0].mxu0
          %v595 = vpop.f32.mrb[0].mxu0
          %v596 = vadd.f32 0.0, %v595
          %v597 = vpop.f32.mrb[0].mxu0
          %598 = vmatprep.mubr.bf16.mxu0 0
          %599 = vmatmul.mubr.bf16.gmra.mrb[0].mxu0 %v507
          %v600 = vpop.f32.mrb[0].mxu0
          %v601 = vadd.f32 0.0, %v600
          %v602 = vpop.f32.mrb[0].mxu0
          %v603 = vpop.f32.mrb[0].mxu0
          %v604 = vadd.f32 0.0, %v603
          %v605 = vpop.f32.mrb[0].mxu0
          %606 = vdwg.mxu0
          %v607 = vpack.c.bf16 %v596, %v593
          %v608 = vpack.c.bf16 %v604, %v601
          %v609 = vld [vmem:[#allocation13] sm:$0xf]
          %v610 = vld [vmem:[#allocation13 + $0x4] sm:$0xf]
          %v611 = vld [vmem:[#allocation13 + $0x8] sm:$0xf]
          %v612 = vld [vmem:[#allocation13 + $0xc] sm:$0xf]
          %v613 = vld [vmem:[#allocation13 + $0x10] sm:$0xf]
          %v614 = vld [vmem:[#allocation13 + $0x14] sm:$0xf]
          %v615 = vld [vmem:[#allocation13 + $0x18] sm:$0xf]
          %v616 = vld [vmem:[#allocation13 + $0x1c] sm:$0xf]
          %v617 = vld [vmem:[#allocation13 + $0x20] sm:$0xf]
          %v618 = vld [vmem:[#allocation13 + $0x24] sm:$0xf]
          %v619 = vld [vmem:[#allocation13 + $0x28] sm:$0xf]
          %v620 = vld [vmem:[#allocation13 + $0x2c] sm:$0xf]
          %v621 = vld [vmem:[#allocation13 + $0x30] sm:$0xf]
          %v622 = vld [vmem:[#allocation13 + $0x34] sm:$0xf]
          %v623 = vld [vmem:[#allocation13 + $0x38] sm:$0xf]
          %v624 = vld [vmem:[#allocation13 + $0x3c] sm:$0xf]
          %v625 = vld [vmem:[%s3] sm:$0x1]
          %v627 = vlaneseq
          %v628 = vshrl.u32 %v627, 7
          %v629 = vsub.s32 0, %v628
          %v630 = vrot.slane %v625, %v629
          %v648 = vunpack.c.l.b16 %v609
          %v649 = vunpack.c.l.b16 %v610
          %v650 = vunpack.c.l.b16 %v611
          %v651 = vunpack.c.l.b16 %v612
          %v652 = vunpack.c.l.b16 %v613
          %v653 = vunpack.c.l.b16 %v614
          %v654 = vunpack.c.l.b16 %v615
          %v655 = vunpack.c.l.b16 %v616
          %v656 = vunpack.c.l.b16 %v617
          %v657 = vunpack.c.l.b16 %v618
          %v658 = vunpack.c.l.b16 %v619
          %v659 = vunpack.c.l.b16 %v620
          %v660 = vunpack.c.l.b16 %v621
          %v661 = vunpack.c.l.b16 %v622
          %v662 = vunpack.c.l.b16 %v623
          %v663 = vunpack.c.l.b16 %v624
          %v664 = vpack.c.b16 %v649, %v648
          %v665 = vpack.c.b16 %v651, %v650
          %v666 = vpack.c.b16 %v653, %v652
          %v667 = vpack.c.b16 %v655, %v654
          %v668 = vpack.c.b16 %v657, %v656
          %v669 = vpack.c.b16 %v659, %v658
          %v670 = vpack.c.b16 %v661, %v660
          %v671 = vpack.c.b16 %v663, %v662
          %680 = vmatprep.subr.bf16.mxu0 0
          %681 = vmatpush1.bf16.msra.mxu0 %v664
          %682 = vmatprep.subr.bf16.mxu0 0
          %683 = vmatpush1.bf16.msra.mxu0 %v665
          %684 = vmatprep.subr.bf16.mxu0 0
          %685 = vmatpush1.bf16.msra.mxu0 %v666
          %686 = vmatprep.subr.bf16.mxu0 0
          %687 = vmatpush1.bf16.msra.mxu0 %v667
          %688 = vmatprep.subr.bf16.mxu0 0
          %689 = vmatpush1.bf16.msra.mxu0 %v668
          %690 = vmatprep.subr.bf16.mxu0 0
          %691 = vmatpush1.bf16.msra.mxu0 %v669
          %692 = vmatprep.subr.bf16.mxu0 0
          %693 = vmatpush1.bf16.msra.mxu0 %v670
          %694 = vmatprep.subr.bf16.mxu0 0
          %695 = vmatpush1.bf16.msra.mxu0 %v671
          %696 = vmatprep.subr.bf16.mxu0 0
          %697 = vmatpush1.bf16.msra.mxu0 0
          %698 = vmatprep.subr.bf16.mxu0 0
          %699 = vmatpush1.bf16.msra.mxu0 0
          %700 = vmatprep.subr.bf16.mxu0 0
          %701 = vmatpush1.bf16.msra.mxu0 0
          %702 = vmatprep.subr.bf16.mxu0 0
          %703 = vmatpush1.bf16.msra.mxu0 0
          %704 = vmatprep.subr.bf16.mxu0 0
          %705 = vmatpush1.bf16.msra.mxu0 0
          %706 = vmatprep.subr.bf16.mxu0 0
          %707 = vmatpush1.bf16.msra.mxu0 0
          %708 = vmatprep.subr.bf16.mxu0 0
          %709 = vmatpush1.bf16.msra.mxu0 0
          %710 = vmatprep.subr.bf16.mxu0 0
          %711 = vmatpush1.bf16.msra.mxu0 0
          %712 = vmatprep.mubr.bf16.mxu0 0
          %713 = vmatmul.mubr.bf16.gmra.mrb[0].mxu0 %v607
          %v714 = vpop.f32.mrb[0].mxu0
          %v715 = vadd.f32 %v630, %v714
          %v716 = vpop.f32.mrb[0].mxu0
          %v717 = vpop.f32.mrb[0].mxu0
          %v718 = vadd.f32 %v630, %v717
          %v719 = vpop.f32.mrb[0].mxu0
          %720 = vmatprep.mubr.bf16.mxu0 0
          %721 = vmatmul.mubr.bf16.gmra.mrb[0].mxu0 %v608
          %v722 = vpop.f32.mrb[0].mxu0
          %v723 = vadd.f32 %v630, %v722
          %v724 = vpop.f32.mrb[0].mxu0
          %v725 = vpop.f32.mrb[0].mxu0
          %v726 = vadd.f32 %v630, %v725
          %v727 = vpop.f32.mrb[0].mxu0
          %728 = vdwg.mxu0
          %s729 = scalar_lea.vmem [#allocation2], %s451
          %730 = vst [vmem:[%s729] sm:$0xff] %v715
          %731 = vst [vmem:[%s729 + $0x8] sm:$0xff] %v718
          %732 = vst [vmem:[%s729 + $0x10] sm:$0xff] %v723
          %733 = vst [vmem:[%s729 + $0x18] sm:$0xff] %v726
          %v734 = vsel %vm462, 1, 0
          %v735 = vsel %vm463, 1, 0
          %v736 = vsel %vm464, 1, 0
          %v737 = vsel %vm465, 1, 0
          %vm738 = vcmp.eq.s32.totalorder %v734, 1
          %vm739 = vcmp.eq.s32.totalorder %v735, 1
          %vm740 = vcmp.eq.s32.totalorder %v736, 1
          %vm741 = vcmp.eq.s32.totalorder %v737, 1
          %v742 = vsel %vm738, %v715, 0.0
          %v743 = vsel %vm739, %v718, 0.0
          %v744 = vsel %vm740, %v723, 0.0
          %v745 = vsel %vm741, %v726, 0.0
          %v746 = vld [vmem:[#allocation4] sm:$0x1]
          %v747 = vadd.f32 %v742, %v743
          %v748 = vadd.f32 %v747, %v744
          %v749 = vadd.f32 %v748, %v745
          %v750 = vrot.slane %v749, 4
          %v751 = vadd.f32 %v749, %v750
          %v752 = vrot.slane %v751, 2
          %v753 = vadd.f32 %v751, %v752
          %v754 = vrot.slane %v753, 1
          %v755 = vadd.f32 %v753, %v754
          %v756 = vadd.f32 %v746, %v755
          %757 = vst [vmem:[#allocation4] sm:$0x1] %v756
          %v758 = vld [vmem:[#allocation5] sm:$0x1]
          %v759 = vmul.f32 %v742, %v742
          %v760 = vmul.f32 %v743, %v743
          %v761 = vmul.f32 %v744, %v744
          %v762 = vmul.f32 %v745, %v745
          %v763 = vadd.f32 %v759, %v760
          %v764 = vadd.f32 %v763, %v761
          %v765 = vadd.f32 %v764, %v762
          %v766 = vrot.slane %v765, 4
          %v767 = vadd.f32 %v765, %v766
          %v768 = vrot.slane %v767, 2
          %v769 = vadd.f32 %v767, %v768
          %v770 = vrot.slane %v769, 1
          %v771 = vadd.f32 %v769, %v770
          %v772 = vadd.f32 %v758, %v771
          %773 = vst [vmem:[#allocation5] sm:$0x1] %v772
        $region80: #{tpu_custom_call.1} parent=59 // pred_fallthru
          _
        %p774 = scmp.eq.s32.totalorder %s33, 1
        // Predicated region
        $region85: #{tpu_custom_call.1} parent=59 // pred_check
          %p775 = pneg %p774
        $region86: #{tpu_custom_call.1} parent=59 // pred_check_branch
          %777 = sbr.rel (%p775) target = $region88
        $region87: #{tpu_custom_call.1} parent=59 // pred_region
          %p778 = scmp.eq.s32.totalorder %s34, 0
          // Predicated region
          $region89: #{tpu_custom_call.1} parent=87 // pred_check
            %p779 = pneg %p778
          $region90: #{tpu_custom_call.1} parent=87 // pred_check_branch
            %781 = sbr.rel (%p779) target = $region92
          $region91: #{tpu_custom_call.1} parent=87 // pred_region
            %v782 = vld [vmem:[#allocation4] sm:$0x1]
            %v783 = vmul.f32 %v782, 0.00862069
            %v784 = vld [vmem:[#allocation5] sm:$0x1]
            %v785 = vmul.f32 %v784, 0.00862069
            %v786 = vmul.f32 %v783, %v783
            %v787 = vsub.f32 %v785, %v786
            %v788 = vmax.f32 %v787, 0.0
            %v789 = vld [vmem:[%s4] sm:$0x1]
            %v790 = vadd.f32 %v788, 1e-05
            %v791 = vrsqrt.pop %v790
            %v792 = vmul.f32 %v789, %v791
            %793 = vst [vmem:[#allocation4] sm:$0x1] %v792
            %v794 = vld [vmem:[%s5] sm:$0x1]
            %v795 = vmul.f32 %v783, %v792
            %v796 = vsub.f32 %v794, %v795
            %797 = vst [vmem:[#allocation5] sm:$0x1] %v796
          $region92: #{tpu_custom_call.1} parent=87 // pred_fallthru
            _
          %s798 = scalar_lea.vmem [#allocation2], %s451
          %v799 = vld [vmem:[%s798] sm:$0xff]
          %v800 = vld [vmem:[%s798 + $0x8] sm:$0xff]
          %v801 = vld [vmem:[%s798 + $0x10] sm:$0xff]
          %v802 = vld [vmem:[%s798 + $0x18] sm:$0xff]
          %v803 = vld [vmem:[#allocation4] sm:$0x1]
          %v805 = vlaneseq
          %v806 = vshrl.u32 %v805, 7
          %v807 = vsub.s32 0, %v806
          %v808 = vrot.slane %v803, %v807
          %v810 = vmul.f32 %v799, %v808
          %v811 = vmul.f32 %v800, %v808
          %v812 = vmul.f32 %v801, %v808
          %v813 = vmul.f32 %v802, %v808
          %v814 = vld [vmem:[#allocation5] sm:$0x1]
          %v816 = vlaneseq
          %v817 = vshrl.u32 %v816, 7
          %v818 = vsub.s32 0, %v817
          %v819 = vrot.slane %v814, %v818
          %v821 = vadd.f32 %v810, %v819
          %v822 = vadd.f32 %v811, %v819
          %v823 = vadd.f32 %v812, %v819
          %v824 = vadd.f32 %v813, %v819
          %v825 = vmax.f32 %v821, 0.0
          %v826 = vmax.f32 %v822, 0.0
          %v827 = vmax.f32 %v823, 0.0
          %v828 = vmax.f32 %v824, 0.0
          %v829 = vpack.c.bf16 %v826, %v825
          %v830 = vpack.c.bf16 %v828, %v827
          %v831 = vld [vmem:[#allocation14] sm:$0xf]
          %v832 = vld [vmem:[#allocation14 + $0x4] sm:$0xf]
          %v833 = vld [vmem:[#allocation14 + $0x8] sm:$0xf]
          %v834 = vld [vmem:[#allocation14 + $0xc] sm:$0xf]
          %v835 = vld [vmem:[#allocation14 + $0x10] sm:$0xf]
          %v836 = vld [vmem:[#allocation14 + $0x14] sm:$0xf]
          %v837 = vld [vmem:[#allocation14 + $0x18] sm:$0xf]
          %v838 = vld [vmem:[#allocation14 + $0x1c] sm:$0xf]
          %v839 = vld [vmem:[#allocation14 + $0x20] sm:$0xf]
          %v840 = vld [vmem:[#allocation14 + $0x24] sm:$0xf]
          %v841 = vld [vmem:[#allocation14 + $0x28] sm:$0xf]
          %v842 = vld [vmem:[#allocation14 + $0x2c] sm:$0xf]
          %v843 = vld [vmem:[#allocation14 + $0x30] sm:$0xf]
          %v844 = vld [vmem:[#allocation14 + $0x34] sm:$0xf]
          %v845 = vld [vmem:[#allocation14 + $0x38] sm:$0xf]
          %v846 = vld [vmem:[#allocation14 + $0x3c] sm:$0xf]
          %v847 = vld [vmem:[%s7] sm:$0x1]
          %v849 = vlaneseq
          %v850 = vshrl.u32 %v849, 7
          %v851 = vsub.s32 0, %v850
          %v852 = vrot.slane %v847, %v851
          %v870 = vunpack.c.l.b16 %v831
          %v871 = vunpack.c.l.b16 %v832
          %v872 = vunpack.c.l.b16 %v833
          %v873 = vunpack.c.l.b16 %v834
          %v874 = vunpack.c.l.b16 %v835
          %v875 = vunpack.c.l.b16 %v836
          %v876 = vunpack.c.l.b16 %v837
          %v877 = vunpack.c.l.b16 %v838
          %v878 = vunpack.c.l.b16 %v839
          %v879 = vunpack.c.l.b16 %v840
          %v880 = vunpack.c.l.b16 %v841
          %v881 = vunpack.c.l.b16 %v842
          %v882 = vunpack.c.l.b16 %v843
          %v883 = vunpack.c.l.b16 %v844
          %v884 = vunpack.c.l.b16 %v845
          %v885 = vunpack.c.l.b16 %v846
          %v886 = vpack.c.b16 %v871, %v870
          %v887 = vpack.c.b16 %v873, %v872
          %v888 = vpack.c.b16 %v875, %v874
          %v889 = vpack.c.b16 %v877, %v876
          %v890 = vpack.c.b16 %v879, %v878
          %v891 = vpack.c.b16 %v881, %v880
          %v892 = vpack.c.b16 %v883, %v882
          %v893 = vpack.c.b16 %v885, %v884
          %902 = vmatprep.subr.bf16.mxu0 0
          %903 = vmatpush1.bf16.msra.mxu0 %v886
          %904 = vmatprep.subr.bf16.mxu0 0
          %905 = vmatpush1.bf16.msra.mxu0 %v887
          %906 = vmatprep.subr.bf16.mxu0 0
          %907 = vmatpush1.bf16.msra.mxu0 %v888
          %908 = vmatprep.subr.bf16.mxu0 0
          %909 = vmatpush1.bf16.msra.mxu0 %v889
          %910 = vmatprep.subr.bf16.mxu0 0
          %911 = vmatpush1.bf16.msra.mxu0 %v890
          %912 = vmatprep.subr.bf16.mxu0 0
          %913 = vmatpush1.bf16.msra.mxu0 %v891
          %914 = vmatprep.subr.bf16.mxu0 0
          %915 = vmatpush1.bf16.msra.mxu0 %v892
          %916 = vmatprep.subr.bf16.mxu0 0
          %917 = vmatpush1.bf16.msra.mxu0 %v893
          %918 = vmatprep.subr.bf16.mxu0 0
          %919 = vmatpush1.bf16.msra.mxu0 0
          %920 = vmatprep.subr.bf16.mxu0 0
          %921 = vmatpush1.bf16.msra.mxu0 0
          %922 = vmatprep.subr.bf16.mxu0 0
          %923 = vmatpush1.bf16.msra.mxu0 0
          %924 = vmatprep.subr.bf16.mxu0 0
          %925 = vmatpush1.bf16.msra.mxu0 0
          %926 = vmatprep.subr.bf16.mxu0 0
          %927 = vmatpush1.bf16.msra.mxu0 0
          %928 = vmatprep.subr.bf16.mxu0 0
          %929 = vmatpush1.bf16.msra.mxu0 0
          %930 = vmatprep.subr.bf16.mxu0 0
          %931 = vmatpush1.bf16.msra.mxu0 0
          %932 = vmatprep.subr.bf16.mxu0 0
          %933 = vmatpush1.bf16.msra.mxu0 0
          %934 = vmatprep.mubr.bf16.mxu0 0
          %935 = vmatmul.mubr.bf16.gmra.mrb[0].mxu0 %v829
          %v936 = vpop.f32.mrb[0].mxu0
          %v937 = vadd.f32 %v852, %v936
          %v938 = vpop.f32.mrb[0].mxu0
          %v939 = vpop.f32.mrb[0].mxu0
          %v940 = vadd.f32 %v852, %v939
          %v941 = vpop.f32.mrb[0].mxu0
          %942 = vmatprep.mubr.bf16.mxu0 0
          %943 = vmatmul.mubr.bf16.gmra.mrb[0].mxu0 %v830
          %v944 = vpop.f32.mrb[0].mxu0
          %v945 = vadd.f32 %v852, %v944
          %v946 = vpop.f32.mrb[0].mxu0
          %v947 = vpop.f32.mrb[0].mxu0
          %v948 = vadd.f32 %v852, %v947
          %v949 = vpop.f32.mrb[0].mxu0
          %950 = vdwg.mxu0
          %s951 = scalar_lea.vmem [#allocation3], %s451
          %952 = vst [vmem:[%s951] sm:$0xff] %v937
          %953 = vst [vmem:[%s951 + $0x8] sm:$0xff] %v940
          %954 = vst [vmem:[%s951 + $0x10] sm:$0xff] %v945
          %955 = vst [vmem:[%s951 + $0x18] sm:$0xff] %v948
          %v956 = vsel %vm462, 1, 0
          %v957 = vsel %vm463, 1, 0
          %v958 = vsel %vm464, 1, 0
          %v959 = vsel %vm465, 1, 0
          %vm960 = vcmp.eq.s32.totalorder %v956, 1
          %vm961 = vcmp.eq.s32.totalorder %v957, 1
          %vm962 = vcmp.eq.s32.totalorder %v958, 1
          %vm963 = vcmp.eq.s32.totalorder %v959, 1
          %v964 = vsel %vm960, %v937, 0.0
          %v965 = vsel %vm961, %v940, 0.0
          %v966 = vsel %vm962, %v945, 0.0
          %v967 = vsel %vm963, %v948, 0.0
          %v968 = vld [vmem:[#allocation6] sm:$0x1]
          %v969 = vadd.f32 %v964, %v965
          %v970 = vadd.f32 %v969, %v966
          %v971 = vadd.f32 %v970, %v967
          %v972 = vrot.slane %v971, 4
          %v973 = vadd.f32 %v971, %v972
          %v974 = vrot.slane %v973, 2
          %v975 = vadd.f32 %v973, %v974
          %v976 = vrot.slane %v975, 1
          %v977 = vadd.f32 %v975, %v976
          %v978 = vadd.f32 %v968, %v977
          %979 = vst [vmem:[#allocation6] sm:$0x1] %v978
          %v980 = vld [vmem:[#allocation7] sm:$0x1]
          %v981 = vmul.f32 %v964, %v964
          %v982 = vmul.f32 %v965, %v965
          %v983 = vmul.f32 %v966, %v966
          %v984 = vmul.f32 %v967, %v967
          %v985 = vadd.f32 %v981, %v982
          %v986 = vadd.f32 %v985, %v983
          %v987 = vadd.f32 %v986, %v984
          %v988 = vrot.slane %v987, 4
          %v989 = vadd.f32 %v987, %v988
          %v990 = vrot.slane %v989, 2
          %v991 = vadd.f32 %v989, %v990
          %v992 = vrot.slane %v991, 1
          %v993 = vadd.f32 %v991, %v992
          %v994 = vadd.f32 %v980, %v993
          %995 = vst [vmem:[#allocation7] sm:$0x1] %v994
        $region88: #{tpu_custom_call.1} parent=59 // pred_fallthru
          _
        %p996 = scmp.eq.s32.totalorder %s33, 2
        // Predicated region
        $region93: #{tpu_custom_call.1} parent=59 // pred_check
          %p997 = pneg %p996
        $region94: #{tpu_custom_call.1} parent=59 // pred_check_branch
          %999 = sbr.rel (%p997) target = $region96
        $region95: #{tpu_custom_call.1} parent=59 // pred_region
          %p1000 = scmp.eq.s32.totalorder %s34, 0
          // Predicated region
          $region97: #{tpu_custom_call.1} parent=95 // pred_check
            %p1001 = pneg %p1000
          $region98: #{tpu_custom_call.1} parent=95 // pred_check_branch
            %1003 = sbr.rel (%p1001) target = $region100
          $region99: #{tpu_custom_call.1} parent=95 // pred_region
            %v1004 = vld [vmem:[#allocation6] sm:$0x1]
            %v1005 = vmul.f32 %v1004, 0.00862069
            %v1006 = vld [vmem:[#allocation7] sm:$0x1]
            %v1007 = vmul.f32 %v1006, 0.00862069
            %v1008 = vmul.f32 %v1005, %v1005
            %v1009 = vsub.f32 %v1007, %v1008
            %v1010 = vmax.f32 %v1009, 0.0
            %v1011 = vld [vmem:[%s8] sm:$0x1]
            %v1012 = vadd.f32 %v1010, 1e-05
            %v1013 = vrsqrt.pop %v1012
            %v1014 = vmul.f32 %v1011, %v1013
            %1015 = vst [vmem:[#allocation6] sm:$0x1] %v1014
            %v1016 = vld [vmem:[%s9] sm:$0x1]
            %v1017 = vmul.f32 %v1005, %v1014
            %v1018 = vsub.f32 %v1016, %v1017
            %1019 = vst [vmem:[#allocation7] sm:$0x1] %v1018
          $region100: #{tpu_custom_call.1} parent=95 // pred_fallthru
            _
          %s1020 = scalar_lea.vmem [#allocation3], %s451
          %v1021 = vld [vmem:[%s1020] sm:$0xff]
          %v1022 = vld [vmem:[%s1020 + $0x8] sm:$0xff]
          %v1023 = vld [vmem:[%s1020 + $0x10] sm:$0xff]
          %v1024 = vld [vmem:[%s1020 + $0x18] sm:$0xff]
          %v1025 = vld [vmem:[#allocation6] sm:$0x1]
          %v1027 = vlaneseq
          %v1028 = vshrl.u32 %v1027, 7
          %v1029 = vsub.s32 0, %v1028
          %v1030 = vrot.slane %v1025, %v1029
          %v1032 = vmul.f32 %v1021, %v1030
          %v1033 = vmul.f32 %v1022, %v1030
          %v1034 = vmul.f32 %v1023, %v1030
          %v1035 = vmul.f32 %v1024, %v1030
          %v1036 = vld [vmem:[#allocation7] sm:$0x1]
          %v1038 = vlaneseq
          %v1039 = vshrl.u32 %v1038, 7
          %v1040 = vsub.s32 0, %v1039
          %v1041 = vrot.slane %v1036, %v1040
          %v1043 = vadd.f32 %v1032, %v1041
          %v1044 = vadd.f32 %v1033, %v1041
          %v1045 = vadd.f32 %v1034, %v1041
          %v1046 = vadd.f32 %v1035, %v1041
          %v1047 = vmax.f32 %v1043, 0.0
          %v1048 = vmax.f32 %v1044, 0.0
          %v1049 = vmax.f32 %v1045, 0.0
          %v1050 = vmax.f32 %v1046, 0.0
          %1051 = vst [vmem:[%s443] sm:$0xff] %v1047
          %1052 = vst [vmem:[%s443 + $0x8] sm:$0xff] %v1048
          %1053 = vst [vmem:[%s443 + $0x10] sm:$0xff] %v1049
          %1054 = vst [vmem:[%s443 + $0x18] sm:$0xff] %v1050
        $region96: #{tpu_custom_call.1} parent=59 // pred_fallthru
          _
        %s1055 = sand.u32 %s272, 1
        %s1056 = scalar_lea.sflag [#allocation10], %s1055
        %s1057 = sand.u32 %s272, 1
        %s1058 = smul.addr %s1057, 32
        %s1059 = scalar_lea.vmem [#allocation16], %s1058
        // Predicated region
        $region101: #{tpu_custom_call.1} parent=59 // pred_check
          %p1060 = pneg %p282
        $region102: #{tpu_custom_call.1} parent=59 // pred_check_branch
          %1062 = sbr.rel (%p1060) target = $region104
        $region103: #{tpu_custom_call.1} parent=59 // pred_region
          %p1063 = scmp.eq.s32.totalorder %s33, 2
          %s1064 = scalar_select %p1063, %s34, 0
          %s1065 = smul.u32 4, %s1064
          %s1067 = ssub.s32 512, 512
          %1068 = vsyncadd %s1056, %s1067
          %s1069 = smul.addr %s1065, 128
          %s1070 = scalar_lea.hbm %s10, %s1069
          %s1071 = sshll.u32 %s1059, 4
          %s1072 = int_to_ptr.vmem [resolvable:$true] %s1071
          %1077 = dma.vmem_to_hbm [thread:$0]  %s1072, 512, %s1070, %s1056, 128, 128, 8
        $region104: #{tpu_custom_call.1} parent=59 // pred_fallthru
          _
      $region60: #{tpu_custom_call.1} parent=5 // pred_fallthru
        _
      %p1078 = scmp.le.s32.totalorder 2, %s24
      // Predicated region
      $region105: #{tpu_custom_call.1} parent=5 // pred_check
        %p1079 = pneg %p1078
      $region106: #{tpu_custom_call.1} parent=5 // pred_check_branch
        %1081 = sbr.rel (%p1079) target = $region108
      $region107: #{tpu_custom_call.1} parent=5 // pred_region
        %s1082 = ssub.s32 %s24, 2
        // Predicated region
        $region109: #{tpu_custom_call.1} parent=107 // pred_check
          %p1083 = pneg %p288
        $region110: #{tpu_custom_call.1} parent=107 // pred_check_branch
          %1085 = sbr.rel (%p1083) target = $region112
        $region111: #{tpu_custom_call.1} parent=107 // pred_region
          %s1086 = sand.u32 %s273, 1
          %s1087 = scalar_lea.sflag [#allocation10], %s1086
          %s1088 = sand.u32 %s273, 1
          %s1089 = smul.addr %s1088, 32
          %s1090 = scalar_lea.vmem [#allocation16], %s1089
          %1091 = dma.done %s1087, 512
        $region112: #{tpu_custom_call.1} parent=107 // pred_fallthru
          _
      $region108: #{tpu_custom_call.1} parent=5 // pred_fallthru
        _
    $region6: #{tpu_custom_call.1} parent=1 // loop_footer
      %s28 = sadd.s32 1, %s24
    $region7: #{tpu_custom_call.1} parent=1 // loop_footer_branch
      %23 = sbr.rel target = $region3
    $region8: #{tpu_custom_call.1} parent=1 // loop_exit
      _
    %1092 = vsyncpa [#allocation9], 1
    %s1093 = scalar_lea.sflag [#allocation9], 1
    %1094 = vsyncpa %s1093, 1
    %1095 = vsyncpa [#allocation12], 1
    %1096 = vsyncpa [#allocation15], 1
    %1097 = vsyncpa [#allocation10], 1
    %s1098 = scalar_lea.sflag [#allocation10], 1
    %1099 = vsyncpa %s1098, 1

</llo_original>
